<compile_context>
chip_gen: v6e
topology: v6e:2x2x1
jax: 0.10.0
libtpu: 0.0.40
codegen_flags: <defaults>
</compile_context>

<pallas_src>
import functools
import math

import jax
import jax.numpy as jnp
from jax.experimental import pallas as pl
from jax.experimental.pallas import tpu as pltpu


def _round_up(x, m):
    return ((x + m - 1) // m) * m


def _pick_tile(n_pad, target):
    """Largest multiple of 128 that divides n_pad and is <= target."""
    best = 128
    for m in range(1, n_pad // 128 + 1):
        t = 128 * m
        if n_pad % t == 0 and t <= target:
            best = t
    return best


def _pad_to(a, target_shape):
    pads = tuple((0, t - s) for s, t in zip(a.shape, target_shape))
    if any(p[1] for p in pads):
        a = jnp.pad(a, pads)
    return a


def _gcn_accum_kernel(*refs, project, add_bias, x_resident, tk,
                      compute_dtype, precision):
    """acc[i] = sum_k adj[i,k] @ rhs[k]; finalize: (acc [@ W]) [+ b] -> out."""
    idx = 0
    adj_ref = refs[idx]; idx += 1
    rhs_ref = refs[idx]; idx += 1
    w_ref = None
    if project:
        w_ref = refs[idx]; idx += 1
    b_ref = None
    if add_bias:
        b_ref = refs[idx]; idx += 1
    o_ref = refs[idx]; idx += 1
    acc_ref = refs[idx]

    k = pl.program_id(2)

    @pl.when(k == 0)
    def _():
        acc_ref[...] = jnp.zeros_like(acc_ref)

    if x_resident:
        # rhs slab (N_pad, C) resident in VMEM for the whole batch element;
        # slice out the k-th (tk, C) block (start is tile-aligned).
        start = pl.multiple_of(k * tk, tk)
        rhs = rhs_ref[pl.ds(start, tk), :]
    else:
        rhs = rhs_ref[...]

    # rhs / W are pre-cast in the wrapper; adj is cast here (read exactly once).
    acc_ref[...] += jnp.dot(
        adj_ref[...].astype(compute_dtype),
        rhs,
        preferred_element_type=jnp.float32,
        precision=precision,
    )

    @pl.when(k == pl.num_programs(2) - 1)
    def _():
        out = acc_ref[...]
        if project:
            # Reassociated path: project once per (b, row-tile), on the bf16
            # MXU when use_bf16 (acc + W already in compute dtype), f32 acc.
            out = jnp.dot(
                out.astype(compute_dtype),
                w_ref[...],
                preferred_element_type=jnp.float32,
                precision=precision,
            )
        if add_bias:
            out = out + b_ref[...]
        o_ref[...] = out.astype(o_ref.dtype)


def graph_convolution(x, adj, weight, bias=None, *, use_bf16=True):
    """Pallas implementation of GraphConvolution.forward.

    x:      [N, F_in]  or [B, N, F_in]
    adj:    [N, N]     or [B, N, N]
    weight: [F_in, F_out]
    bias:   [F_out] or None
    use_bf16: bf16 MXU inputs with f32 accumulation (default).  False = strict
              f32 (precision=HIGHEST on every dot).
    """
    squeeze_batch = False
    if x.ndim == 2:  # non-batch mode (torch.mm path)
        x = x[None]
        adj = adj[None]
        squeeze_batch = True

    B, N, F_in = x.shape
    F_out = weight.shape[1]
    out_dtype = x.dtype

    compute_dtype = jnp.bfloat16 if use_bf16 else jnp.float32
    precision = None if use_bf16 else jax.lax.Precision.HIGHEST

    F_in_pad = _round_up(F_in, 128)
    F_out_pad = _round_up(F_out, 128)
    N_pad = _round_up(N, 128)

    project = F_in_pad <= F_out_pad          # (adj @ x) @ W
    add_bias = bias is not None

    if project:
        rhs = x
        rhs_cols = F_in_pad
    else:
        # Hoist support = x @ W out of the accumulation grid: computed once per
        # batch instead of once per (output-row tile, k step).
        # Note: when use_bf16 the f32 support is rounded once to bf16 below.
        rhs = jnp.matmul(x, weight, precision=precision,
                         preferred_element_type=jnp.float32)
        rhs_cols = F_out_pad

    rhs_p = _pad_to(rhs, (B, N_pad, rhs_cols)).astype(compute_dtype)
    adj_p = _pad_to(adj, (B, N_pad, N_pad))          # cast in-kernel
    w_p = (_pad_to(weight, (F_in_pad, F_out_pad)).astype(compute_dtype)
           if project else None)
    b_p = (_pad_to(bias, (F_out_pad,)).reshape(1, F_out_pad).astype(jnp.float32)
           if add_bias else None)

    # ---- tile / VMEM sizing -------------------------------------------------
    adj_item = jnp.dtype(adj_p.dtype).itemsize
    rhs_item = jnp.dtype(compute_dtype).itemsize
    out_item = jnp.dtype(out_dtype).itemsize

    try:
        vmem_cap = int(getattr(pltpu.get_tpu_info(), "vmem_capacity_bytes",
                               64 * 1024 * 1024))
    except Exception:
        vmem_cap = 64 * 1024 * 1024
    budget = int(vmem_cap * 0.55)            # headroom for compiler scratch

    if vmem_cap >= 96 * 1024 * 1024:         # v5e / v6e: 128 MiB VMEM
        tm_target, tk_target = 512, 1024
    else:                                    # v7x: 64 MiB VMEM
        tm_target, tk_target = 256, 1024
    # Keep both TensorCores busy when there is no batch axis to shard.
    if B == 1 and N_pad >= 256:
        tm_target = min(tm_target, N_pad // 2)

    tm = _pick_tile(N_pad, tm_target)
    tk = _pick_tile(N_pad, tk_target)

    slab_bytes = N_pad * rhs_cols * rhs_item
    x_resident = 2 * slab_bytes <= max(budget // 3, 4 * 1024 * 1024)

    def vmem_estimate(tm_, tk_, resident):
        est = 2 * tm_ * tk_ * adj_item                       # adj, double-buffered
        est += 2 * slab_bytes if resident else 2 * tk_ * rhs_cols * rhs_item
        est += tm_ * rhs_cols * 4                            # f32 accumulator
        est += 2 * tm_ * F_out_pad * out_item                # output tiles
        if project:
            est += F_in_pad * F_out_pad * rhs_item           # W (single buffer)
        if add_bias:
            est += F_out_pad * 4
        return est

    while vmem_estimate(tm, tk, x_resident) > budget and (
            tk > 128 or tm > 128 or x_resident):
        if tk > 128:
            tk = _pick_tile(N_pad, tk // 2)
        elif tm > 128:
            tm = _pick_tile(N_pad, tm // 2)
        else:
            x_resident = False

    vmem_limit = int(min(max(1.4 * vmem_estimate(tm, tk, x_resident) + (4 << 20),
                             32 << 20),
                         0.9 * vmem_cap))

    # ---- grid / specs -------------------------------------------------------
    grid = (B, N_pad // tm, N_pad // tk)

    adj_spec = pl.BlockSpec((pl.Squeezed(), tm, tk), lambda b, i, k: (b, i, k))
    if x_resident:
        rhs_spec = pl.BlockSpec((pl.Squeezed(), N_pad, rhs_cols),
                                lambda b, i, k: (b, 0, 0))
    else:
        rhs_spec = pl.BlockSpec((pl.Squeezed(), tk, rhs_cols),
                                lambda b, i, k: (b, k, 0))
    o_spec = pl.BlockSpec((pl.Squeezed(), tm, F_out_pad), lambda b, i, k: (b, i, 0))

    kernel = functools.partial(
        _gcn_accum_kernel,
        project=project, add_bias=add_bias, x_resident=x_resident,
        tk=tk, compute_dtype=compute_dtype, precision=precision,
    )

    def _run(single_buffer_consts):
        const_kwargs = (dict(pipeline_mode=pl.Buffered(1))
                        if single_buffer_consts else {})
        in_specs = [adj_spec, rhs_spec]
        inputs = [adj_p, rhs_p]
        if project:
            in_specs.append(pl.BlockSpec((F_in_pad, F_out_pad),
                                         lambda b, i, k: (0, 0), **const_kwargs))
            inputs.append(w_p)
        if add_bias:
            in_specs.append(pl.BlockSpec((1, F_out_pad),
                                         lambda b, i, k: (0, 0), **const_kwargs))
            inputs.append(b_p)

        return pl.pallas_call(
            kernel,
            out_shape=jax.ShapeDtypeStruct((B, N_pad, F_out_pad), out_dtype),
            grid_spec=pltpu.PrefetchScalarGridSpec(
                num_scalar_prefetch=0,
                grid=grid,
                in_specs=in_specs,
                out_specs=o_spec,
                scratch_shapes=[pltpu.VMEM((tm, rhs_cols), jnp.float32)],
            ),
            compiler_params=pltpu.CompilerParams(
                dimension_semantics=("parallel", "parallel", "arbitrary"),
                vmem_limit_bytes=vmem_limit,
            ),
        )(*inputs)

    try:
        # W / bias block index never changes -> single buffer saves VMEM.
        out_p = _run(True)
    except Exception:
        # Conservative fallback if this Pallas build rejects Buffered(1).
        out_p = _run(False)

    out = out_p[:, :N, :F_out]
    if squeeze_batch:
        out = out[0]
    return out


def init_params(key, in_features, out_features, bias=True, dtype=jnp.float32):
    """Deterministic init matching reset_parameters: uniform(-stdv, stdv)."""
    stdv = 1.0 / math.sqrt(out_features)
    kw, kb = jax.random.split(key)
    weight = jax.random.uniform(
        kw, (in_features, out_features), dtype=dtype, minval=-stdv, maxval=stdv)
    b = (jax.random.uniform(kb, (out_features,), dtype=dtype,
                            minval=-stdv, maxval=stdv)
         if bias else None)
    return weight, b


if __name__ == "__main__":
    key = jax.random.PRNGKey(0)
    k_x, k_adj, k_p, k_x2, k_p2, k_xs, k_adjs = jax.random.split(key, 7)
    hp = jax.lax.Precision.HIGHEST

    B, N = 2, 16

    # --- path 1: reassociated (F_in <= F_out), batched, with bias ------------
    in_f, out_f = 8, 32
    weight, bias = init_params(k_p, in_f, out_f, bias=True)
    x = jax.random.normal(k_x, (B, N, in_f), dtype=jnp.float32)
    adj = jax.random.normal(k_adj, (B, N, N), dtype=jnp.float32)
    ref = jnp.matmul(adj, jnp.matmul(x, weight, precision=hp), precision=hp) + bias

    out_bf = jax.block_until_ready(graph_convolution(x, adj, weight, bias))
    assert out_bf.shape == (B, N, out_f)
    assert jnp.allclose(out_bf, ref, atol=1e-1, rtol=1e-1)

    out_f32 = jax.block_until_ready(
        graph_convolution(x, adj, weight, bias, use_bf16=False))
    assert jnp.allclose(out_f32, ref, atol=1e-4, rtol=1e-4)

    # --- path 2: hoisted support (F_in > F_out), batched, with bias ----------
    in2, out2 = 256, 32
    w2, b2 = init_params(k_p2, in2, out2, bias=True)
    x2 = jax.random.normal(k_x2, (B, N, in2), dtype=jnp.float32)
    ref2 = jnp.matmul(adj, jnp.matmul(x2, w2, precision=hp), precision=hp) + b2

    out2_bf = jax.block_until_ready(graph_convolution(x2, adj, w2, b2))
    assert out2_bf.shape == (B, N, out2)
    # bf16 rounding error grows with F_in; loose tolerance for the bf16 path.
    assert jnp.allclose(out2_bf, ref2, atol=2.5e-1, rtol=1e-1)

    out2_f32 = jax.block_until_ready(
        graph_convolution(x2, adj, w2, b2, use_bf16=False))
    assert jnp.allclose(out2_f32, ref2, atol=1e-4, rtol=1e-4)

    # --- non-batched mode (torch.mm path), no bias ----------------------------
    xs = jax.random.normal(k_xs, (N, in_f), dtype=jnp.float32)
    adjs = jax.random.normal(k_adjs, (N, N), dtype=jnp.float32)
    out_s = jax.block_until_ready(
        graph_convolution(xs, adjs, weight, None, use_bf16=False))
    ref_s = jnp.matmul(adjs, jnp.matmul(xs, weight, precision=hp), precision=hp)
    assert out_s.shape == (N, out_f)
    assert jnp.allclose(out_s, ref_s, atol=1e-4, rtol=1e-4)

    print("KERNEL_OK")
</pallas_src>

<mosaic_0001>
module attributes {stable_mosaic.version = 11 : i64} {
  func.func @_gcn_accum_kernel(%arg0: i32, %arg1: i32, %arg2: i32, %arg3: memref<1x128x128xf32, #tpu.memory_space<vmem>>, %arg4: memref<1x128x128xbf16, #tpu.memory_space<vmem>>, %arg5: memref<128x128xbf16, #tpu.memory_space<vmem>>, %arg6: memref<1x128xf32, #tpu.memory_space<vmem>>, %arg7: memref<1x128x128xf32, #tpu.memory_space<vmem>>, %arg8: memref<128x128xf32, #tpu.memory_space<vmem>>) attributes {dimension_semantics = [#tpu.dimension_semantics<parallel>, #tpu.dimension_semantics<parallel>, #tpu.dimension_semantics<arbitrary>], iteration_bounds = array<i64: 2, 1, 1>, scalar_prefetch = 0 : i64, scratch_operands = 1 : i64, tpu.core_type = #tpu.core_type<tc>, window_params = [{transform_indices = @transform_0, window_bounds = array<i64: 1, 128, 128>}, {transform_indices = @transform_1, window_bounds = array<i64: 1, 128, 128>}, {pipeline_mode = #tpu.pipeline_mode<synchronous>, transform_indices = @transform_2, window_bounds = array<i64: 128, 128>}, {pipeline_mode = #tpu.pipeline_mode<synchronous>, transform_indices = @transform_3, window_bounds = array<i64: 1, 128>}, {transform_indices = @transform_4, window_bounds = array<i64: 1, 128, 128>}]} {
    %c0_i32 = arith.constant 0 : i32
    %0 = arith.cmpi eq, %arg2, %c0_i32 : i32
    %1 = arith.extui %0 : i1 to i32
    %c0_i32_0 = arith.constant 0 : i32
    %2 = arith.cmpi ne, %1, %c0_i32_0 : i32
    scf.if %2 {
      %cst_11 = arith.constant 0.000000e+00 : f32
      %18 = vector.broadcast %cst_11 : f32 to vector<128x128xf32>
      %c0_12 = arith.constant 0 : index
      %c0_13 = arith.constant 0 : index
      %19 = vector.load %arg8[%c0_12, %c0_13] : memref<128x128xf32, #tpu.memory_space<vmem>>, vector<128x128xf32>
      tpu.vector_store %arg8[%c0_12, %c0_13], %18 {strides = array<i32>} : memref<128x128xf32, #tpu.memory_space<vmem>>, vector<128x128xf32>,
    } else {
    }
    %c128_i32 = arith.constant 128 : i32
    %3 = arith.muli %arg2, %c128_i32 : i32
    %4 = tpu.assume_multiple %3, 128 : i32
    %c0 = arith.constant 0 : index
    %5 = arith.index_cast %4 : i32 to index
    %c0_1 = arith.constant 0 : index
    %6 = vector.load %arg4[%c0, %5, %c0_1] : memref<1x128x128xbf16, #tpu.memory_space<vmem>>, vector<1x128x128xbf16>
    %7 = vector.shape_cast %6 : vector<1x128x128xbf16> to vector<128x128xbf16>
    %c0_2 = arith.constant 0 : index
    %c0_3 = arith.constant 0 : index
    %8 = vector.load %arg8[%c0_2, %c0_3] : memref<128x128xf32, #tpu.memory_space<vmem>>, vector<128x128xf32>
    %c0_4 = arith.constant 0 : index
    %c0_5 = arith.constant 0 : index
    %c0_6 = arith.constant 0 : index
    %9 = vector.load %arg3[%c0_4, %c0_5, %c0_6] : memref<1x128x128xf32, #tpu.memory_space<vmem>>, vector<1x128x128xf32>
    %10 = vector.shape_cast %9 : vector<1x128x128xf32> to vector<128x128xf32>
    %11 = arith.truncf %10 : vector<128x128xf32> to vector<128x128xbf16>
    %cst = arith.constant dense<0.000000e+00> : vector<128x128xf32>
    %12 = tpu.matmul %11, %7, %cst {dimension_numbers = #tpu.dot_dimension_numbers<[1], [0], [0], [1], [0, 0, 1, 1], [], []>} : vector<128x128xbf16>, vector<128x128xbf16>, vector<128x128xf32> -> vector<128x128xf32>
    %13 = arith.addf %8, %12 : vector<128x128xf32>
    %c0_7 = arith.constant 0 : index
    %c0_8 = arith.constant 0 : index
    %14 = vector.load %arg8[%c0_7, %c0_8] : memref<128x128xf32, #tpu.memory_space<vmem>>, vector<128x128xf32>
    tpu.vector_store %arg8[%c0_7, %c0_8], %13 {strides = array<i32>} : memref<128x128xf32, #tpu.memory_space<vmem>>, vector<128x128xf32>,
    %c0_i32_9 = arith.constant 0 : i32
    %15 = arith.cmpi eq, %arg2, %c0_i32_9 : i32
    %16 = arith.extui %15 : i1 to i32
    %c0_i32_10 = arith.constant 0 : i32
    %17 = arith.cmpi ne, %16, %c0_i32_10 : i32
    scf.if %17 {
      %c0_11 = arith.constant 0 : index
      %c0_12 = arith.constant 0 : index
      %18 = vector.load %arg8[%c0_11, %c0_12] : memref<128x128xf32, #tpu.memory_space<vmem>>, vector<128x128xf32>
      %19 = arith.truncf %18 : vector<128x128xf32> to vector<128x128xbf16>
      %c0_13 = arith.constant 0 : index
      %c0_14 = arith.constant 0 : index
      %20 = vector.load %arg5[%c0_13, %c0_14] : memref<128x128xbf16, #tpu.memory_space<vmem>>, vector<128x128xbf16>
      %cst_15 = arith.constant dense<0.000000e+00> : vector<128x128xf32>
      %21 = tpu.matmul %19, %20, %cst_15 {dimension_numbers = #tpu.dot_dimension_numbers<[1], [0], [0], [1], [0, 0, 1, 1], [], []>} : vector<128x128xbf16>, vector<128x128xbf16>, vector<128x128xf32> -> vector<128x128xf32>
      %c0_16 = arith.constant 0 : index
      %c0_17 = arith.constant 0 : index
      %22 = vector.load %arg6[%c0_16, %c0_17] : memref<1x128xf32, #tpu.memory_space<vmem>>, vector<1x128xf32>
      %23 = vector.broadcast %22 : vector<1x128xf32> to vector<128x128xf32>
      %24 = arith.addf %21, %23 : vector<128x128xf32>
      %c0_18 = arith.constant 0 : index
      %c0_19 = arith.constant 0 : index
      %c0_20 = arith.constant 0 : index
      %25 = vector.load %arg7[%c0_18, %c0_19, %c0_20] : memref<1x128x128xf32, #tpu.memory_space<vmem>>, vector<1x128x128xf32>
      %26 = vector.shape_cast %25 : vector<1x128x128xf32> to vector<128x128xf32>
      %27 = vector.shape_cast %24 : vector<128x128xf32> to vector<1x128x128xf32>
      tpu.vector_store %arg7[%c0_18, %c0_19, %c0_20], %27 {strides = array<i32>} : memref<1x128x128xf32, #tpu.memory_space<vmem>>, vector<1x128x128xf32>,
    } else {
    }
    return
  }
  func.func @transform_0(%arg0: i32, %arg1: i32, %arg2: i32) -> (i32, i32, i32) {
    %c0_i32 = arith.constant 0 : i32
    return %arg0, %arg1, %arg2 : i32, i32, i32
  }
  func.func @transform_1(%arg0: i32, %arg1: i32, %arg2: i32) -> (i32, i32, i32) {
    %c0_i32 = arith.constant 0 : i32
    %c0_i32_0 = arith.constant 0 : i32
    %c0_i32_1 = arith.constant 0 : i32
    return %arg0, %c0_i32, %c0_i32_0 : i32, i32, i32
  }
  func.func @transform_2(%arg0: i32, %arg1: i32, %arg2: i32) -> (i32, i32) {
    %c0_i32 = arith.constant 0 : i32
    %c0_i32_0 = arith.constant 0 : i32
    %c0_i32_1 = arith.constant 0 : i32
    return %c0_i32, %c0_i32_0 : i32, i32
  }
  func.func @transform_3(%arg0: i32, %arg1: i32, %arg2: i32) -> (i32, i32) {
    %c0_i32 = arith.constant 0 : i32
    %c0_i32_0 = arith.constant 0 : i32
    %c0_i32_1 = arith.constant 0 : i32
    return %c0_i32, %c0_i32_0 : i32, i32
  }
  func.func @transform_4(%arg0: i32, %arg1: i32, %arg2: i32) -> (i32, i32, i32) {
    %c0_i32 = arith.constant 0 : i32
    %c0_i32_0 = arith.constant 0 : i32
    return %arg0, %arg1, %c0_i32 : i32, i32, i32
  }
}

module attributes {stable_mosaic.version = 11 : i64} {
  func.func @_gcn_accum_kernel(%arg0: i32, %arg1: i32, %arg2: i32, %arg3: memref<1x128x128xf32, #tpu.memory_space<vmem>>, %arg4: memref<1x128x128xbf16, #tpu.memory_space<vmem>>, %arg5: memref<128x128xbf16, #tpu.memory_space<vmem>>, %arg6: memref<1x128xf32, #tpu.memory_space<vmem>>, %arg7: memref<1x128x128xf32, #tpu.memory_space<vmem>>, %arg8: memref<128x128xf32, #tpu.memory_space<vmem>>) attributes {dimension_semantics = [#tpu.dimension_semantics<parallel>, #tpu.dimension_semantics<parallel>, #tpu.dimension_semantics<arbitrary>], iteration_bounds = array<i64: 2, 1, 1>, scalar_prefetch = 0 : i64, scratch_operands = 1 : i64, tpu.core_type = #tpu.core_type<tc>, window_params = [{transform_indices = @transform_0, window_bounds = array<i64: 1, 128, 128>}, {transform_indices = @transform_1, window_bounds = array<i64: 1, 128, 128>}, {pipeline_mode = #tpu.pipeline_mode<synchronous>, transform_indices = @transform_2, window_bounds = array<i64: 128, 128>}, {pipeline_mode = #tpu.pipeline_mode<synchronous>, transform_indices = @transform_3, window_bounds = array<i64: 1, 128>}, {transform_indices = @transform_4, window_bounds = array<i64: 1, 128, 128>}]} {
    %c0_i32 = arith.constant 0 : i32
    %0 = arith.cmpi eq, %arg2, %c0_i32 : i32
    %1 = arith.extui %0 : i1 to i32
    %c0_i32_0 = arith.constant 0 : i32
    %2 = arith.cmpi ne, %1, %c0_i32_0 : i32
    scf.if %2 {
      %cst_11 = arith.constant 0.000000e+00 : f32
      %18 = vector.broadcast %cst_11 : f32 to vector<128x128xf32>
      %c0_12 = arith.constant 0 : index
      %c0_13 = arith.constant 0 : index
      %19 = vector.load %arg8[%c0_12, %c0_13] : memref<128x128xf32, #tpu.memory_space<vmem>>, vector<128x128xf32>
      tpu.vector_store %arg8[%c0_12, %c0_13], %18 {strides = array<i32>} : memref<128x128xf32, #tpu.memory_space<vmem>>, vector<128x128xf32>,
    } else {
    }
    %c128_i32 = arith.constant 128 : i32
    %3 = arith.muli %arg2, %c128_i32 : i32
    %4 = tpu.assume_multiple %3, 128 : i32
    %c0 = arith.constant 0 : index
    %5 = arith.index_cast %4 : i32 to index
    %c0_1 = arith.constant 0 : index
    %6 = vector.load %arg4[%c0, %5, %c0_1] : memref<1x128x128xbf16, #tpu.memory_space<vmem>>, vector<1x128x128xbf16>
    %7 = vector.shape_cast %6 : vector<1x128x128xbf16> to vector<128x128xbf16>
    %c0_2 = arith.constant 0 : index
    %c0_3 = arith.constant 0 : index
    %8 = vector.load %arg8[%c0_2, %c0_3] : memref<128x128xf32, #tpu.memory_space<vmem>>, vector<128x128xf32>
    %c0_4 = arith.constant 0 : index
    %c0_5 = arith.constant 0 : index
    %c0_6 = arith.constant 0 : index
    %9 = vector.load %arg3[%c0_4, %c0_5, %c0_6] : memref<1x128x128xf32, #tpu.memory_space<vmem>>, vector<1x128x128xf32>
    %10 = vector.shape_cast %9 : vector<1x128x128xf32> to vector<128x128xf32>
    %11 = arith.truncf %10 : vector<128x128xf32> to vector<128x128xbf16>
    %cst = arith.constant dense<0.000000e+00> : vector<128x128xf32>
    %12 = tpu.matmul %11, %7, %cst {dimension_numbers = #tpu.dot_dimension_numbers<[1], [0], [0], [1], [0, 0, 1, 1], [], []>} : vector<128x128xbf16>, vector<128x128xbf16>, vector<128x128xf32> -> vector<128x128xf32>
    %13 = arith.addf %8, %12 : vector<128x128xf32>
    %c0_7 = arith.constant 0 : index
    %c0_8 = arith.constant 0 : index
    %14 = vector.load %arg8[%c0_7, %c0_8] : memref<128x128xf32, #tpu.memory_space<vmem>>, vector<128x128xf32>
    tpu.vector_store %arg8[%c0_7, %c0_8], %13 {strides = array<i32>} : memref<128x128xf32, #tpu.memory_space<vmem>>, vector<128x128xf32>,
    %c0_i32_9 = arith.constant 0 : i32
    %15 = arith.cmpi eq, %arg2, %c0_i32_9 : i32
    %16 = arith.extui %15 : i1 to i32
    %c0_i32_10 = arith.constant 0 : i32
    %17 = arith.cmpi ne, %16, %c0_i32_10 : i32
    scf.if %17 {
      %c0_11 = arith.constant 0 : index
      %c0_12 = arith.constant 0 : index
      %18 = vector.load %arg8[%c0_11, %c0_12] : memref<128x128xf32, #tpu.memory_space<vmem>>, vector<128x128xf32>
      %19 = arith.truncf %18 : vector<128x128xf32> to vector<128x128xbf16>
      %c0_13 = arith.constant 0 : index
      %c0_14 = arith.constant 0 : index
      %20 = vector.load %arg5[%c0_13, %c0_14] : memref<128x128xbf16, #tpu.memory_space<vmem>>, vector<128x128xbf16>
      %cst_15 = arith.constant dense<0.000000e+00> : vector<128x128xf32>
      %21 = tpu.matmul %19, %20, %cst_15 {dimension_numbers = #tpu.dot_dimension_numbers<[1], [0], [0], [1], [0, 0, 1, 1], [], []>} : vector<128x128xbf16>, vector<128x128xbf16>, vector<128x128xf32> -> vector<128x128xf32>
      %c0_16 = arith.constant 0 : index
      %c0_17 = arith.constant 0 : index
      %22 = vector.load %arg6[%c0_16, %c0_17] : memref<1x128xf32, #tpu.memory_space<vmem>>, vector<1x128xf32>
      %23 = vector.broadcast %22 : vector<1x128xf32> to vector<128x128xf32>
      %24 = arith.addf %21, %23 : vector<128x128xf32>
      %c0_18 = arith.constant 0 : index
      %c0_19 = arith.constant 0 : index
      %c0_20 = arith.constant 0 : index
      %25 = vector.load %arg7[%c0_18, %c0_19, %c0_20] : memref<1x128x128xf32, #tpu.memory_space<vmem>>, vector<1x128x128xf32>
      %26 = vector.shape_cast %25 : vector<1x128x128xf32> to vector<128x128xf32>
      %27 = vector.shape_cast %24 : vector<128x128xf32> to vector<1x128x128xf32>
      tpu.vector_store %arg7[%c0_18, %c0_19, %c0_20], %27 {strides = array<i32>} : memref<1x128x128xf32, #tpu.memory_space<vmem>>, vector<1x128x128xf32>,
    } else {
    }
    return
  }
  func.func @transform_0(%arg0: i32, %arg1: i32, %arg2: i32) -> (i32, i32, i32) {
    %c0_i32 = arith.constant 0 : i32
    return %arg0, %arg1, %arg2 : i32, i32, i32
  }
  func.func @transform_1(%arg0: i32, %arg1: i32, %arg2: i32) -> (i32, i32, i32) {
    %c0_i32 = arith.constant 0 : i32
    %c0_i32_0 = arith.constant 0 : i32
    %c0_i32_1 = arith.constant 0 : i32
    return %arg0, %c0_i32, %c0_i32_0 : i32, i32, i32
  }
  func.func @transform_2(%arg0: i32, %arg1: i32, %arg2: i32) -> (i32, i32) {
    %c0_i32 = arith.constant 0 : i32
    %c0_i32_0 = arith.constant 0 : i32
    %c0_i32_1 = arith.constant 0 : i32
    return %c0_i32, %c0_i32_0 : i32, i32
  }
  func.func @transform_3(%arg0: i32, %arg1: i32, %arg2: i32) -> (i32, i32) {
    %c0_i32 = arith.constant 0 : i32
    %c0_i32_0 = arith.constant 0 : i32
    %c0_i32_1 = arith.constant 0 : i32
    return %c0_i32, %c0_i32_0 : i32, i32
  }
  func.func @transform_4(%arg0: i32, %arg1: i32, %arg2: i32) -> (i32, i32, i32) {
    %c0_i32 = arith.constant 0 : i32
    %c0_i32_0 = arith.constant 0 : i32
    return %arg0, %arg1, %c0_i32 : i32, i32, i32
  }
}

</mosaic_0001>

<llo_original>
// kernel: tpu_custom_call.1
$region0: #{tpu_custom_call.1}
  #allocation0 [shape = 'u32[]', space=smem, size = 0x4, offset = 0x4, fixed_abs, tag = 'smem constant byte address 0x4 - core index']
  #allocation1 [shape = 'u32[144,128]{1,0:T(1,128)}', space=vmem, size = 0x12000, scoped, tag = 'internal scratch']
  #allocation2 [shape = 'f32[128,128]{1,0:T(8,128)}', space=vmem, size = 0x10000, scoped, tag = 'scratch operand']
  %s0 = inlined_call_operand.hbm [shape: f32[2,128,128], index: 0, kind: input, shape index: {}]
  %s1 = inlined_call_operand.hbm [shape: bf16[2,128,128], index: 1, kind: input, shape index: {}]
  %s2 = inlined_call_operand.hbm [shape: bf16[128,128], index: 2, kind: input, shape index: {}]
  %s3 = inlined_call_operand.vmem [shape: f32[1,128], index: 3, kind: input, shape index: {}]
  %s4 = inlined_call_operand.hbm [shape: f32[2,128,128], index: 4, kind: output, shape index: {}]
  %s5 = sld [smem:[#allocation0]]
  $region69: #{tpu_custom_call.1} parent=0
    _
  %s7 = ssub.s32 1, %s5
  %s8 = scalar_select 0, %s7, %s5
  $region1: #{tpu_custom_call.1} parent=0
    #allocation3 [shape = 'u8[131072]{0}', space=vmem, size = 0x20000, scoped, tag = 'input window, operand 0']
    #allocation4 [shape = 's32[2]{0}', space=sflag, size = 0x8, scoped, tag = 'scoped memory for tpu_custom_call.1']
    #allocation5 [shape = 's32[2]{0}', space=sflag, size = 0x8, scoped, tag = 'scoped memory for tpu_custom_call.1']
    #allocation6 [shape = 'u8[65536]{0}', space=vmem, size = 0x10000, scoped, tag = 'input window, operand 1']
    #allocation7 [shape = 's32[2]{0}', space=sflag, size = 0x8, scoped, tag = 'scoped memory for tpu_custom_call.1']
    #allocation8 [shape = 'u8[32768]{0}', space=vmem, size = 0x8000, scoped, tag = 'input window, operand 2, single buffered']
    #allocation9 [shape = 'u8[131072]{0}', space=vmem, size = 0x20000, scoped, tag = 'output window, operand 0']
    %9 = vsyncpa [#allocation4], 0
    %s10 = scalar_lea.sflag [#allocation4], 1
    %11 = vsyncpa %s10, 0
    %12 = vsyncpa [#allocation7], 0
    %s13 = scalar_lea.sflag [#allocation7], 1
    %14 = vsyncpa %s13, 0
    %15 = vsyncpa [#allocation5], 0
    %s16 = scalar_lea.sflag [#allocation5], 1
    %17 = vsyncpa %s16, 0
    loop: start=0, step=1, limit=4
    $region2: #{tpu_custom_call.1} parent=1 // loop_pre_header
      _
    $region3: #{tpu_custom_call.1} parent=1 // loop_header
      %s19 = sphi 0, %s23
      %p20 = scmp.ge.s32.totalorder %s19, 4
      %s26 = sphi 0, %s45
      %s27 = sphi 0, %s41
      %s28 = sphi 0, %s37
      %s29 = sphi 0, %s26
      %s30 = sphi 0, %s27
      %s31 = sphi 0, %s28
      %s32 = sphi 0, %s29
      %s33 = sphi 0, %s30
      %s34 = sphi 0, %s31
      %s52 = sphi 0, %s54
      %s55 = sphi 0, %s52
      %s56 = sphi 0, %s55
      %s72 = sphi 0, %s56
      %s78 = sphi 0, %s80
      %s81 = sphi 0, %s78
      %s82 = sphi 0, %s81
      %s98 = sphi 0, %s82
      %s102 = sphi 0, %s102
      %s104 = sphi 0, %s102
      %s105 = sphi 0, %s104
      %s119 = sphi 0, %s105
      %s123 = sphi 0, %s123
      %s125 = sphi 0, %s123
      %s126 = sphi 0, %s125
      %s140 = sphi 0, %s126
      %s148 = sphi 0, %s150
      %s151 = sphi 0, %s148
      %s152 = sphi 0, %s151
      %s168 = sphi 0, %s152
    $region4: #{tpu_custom_call.1} parent=1 // loop_header_branch
      %22 = sbr.rel (%p20) target = $region8
    $region5: #{tpu_custom_call.1} parent=1 // loop_body
      %s24 = ssub.s32 %s19, 1
      %s25 = ssub.s32 %s19, 2
      %s35 = sadd.s32 1, %s28
      %p36 = scmp.ge.s32.totalorder %s35, 1
      %s37 = scalar_select %p36, 0, %s35
      %s38 = sadd.s32 1, %s27
      %s39 = scalar_select %p36, %s38, %s27
      %p40 = scmp.ge.s32.totalorder %s39, 1
      %s41 = scalar_select %p40, 0, %s39
      %s42 = sadd.s32 1, %s26
      %s43 = scalar_select %p40, %s42, %s26
      %p44 = scmp.ge.s32.totalorder %s43, 2
      %s45 = scalar_select %p44, 0, %s43
      %s46 = ssub.s32 %s26, %s45
      %s47 = ssub.s32 %s27, %s41
      %s48 = sor.u32 %s46, %s47
      %s49 = ssub.s32 %s28, %s37
      %s50 = sor.u32 %s48, %s49
      %p51 = scmp.eq.s32.totalorder %s50, 0
      %s53 = sadd.s32 %s52, 1
      %s54 = scalar_select %p51, %s52, %s53
      %p57 = pneg %p51
      %p58 = scmp.eq.s32.totalorder %s19, 1
      %p59 = por %p57, %p58
      %p60 = scmp.ne.s32.totalorder %s52, %s55
      %p61 = scmp.eq.s32.totalorder %s19, 0
      %p62 = por %p60, %p61
      %p63 = scmp.ne.s32.totalorder %s52, %s55
      %p64 = scmp.eq.s32.totalorder %s24, 1
      %p65 = por %p63, %p64
      %p66 = scmp.ne.s32.totalorder %s55, %s56
      %p67 = scmp.eq.s32.totalorder %s24, 0
      %p68 = por %p66, %p67
      %p69 = scmp.ne.s32.totalorder %s55, %s56
      %p70 = scmp.eq.s32.totalorder %s25, 1
      %p71 = por %p69, %p70
      %p73 = scmp.ne.s32.totalorder %s56, %s72
      %p74 = scmp.eq.s32.totalorder %s25, 0
      %p75 = por %p73, %p74
      %s76 = ssub.s32 %s26, %s45
      %p77 = scmp.eq.s32.totalorder %s76, 0
      %s79 = sadd.s32 %s78, 1
      %s80 = scalar_select %p77, %s78, %s79
      %p83 = pneg %p77
      %p84 = scmp.eq.s32.totalorder %s19, 1
      %p85 = por %p83, %p84
      %p86 = scmp.ne.s32.totalorder %s78, %s81
      %p87 = scmp.eq.s32.totalorder %s19, 0
      %p88 = por %p86, %p87
      %p89 = scmp.ne.s32.totalorder %s78, %s81
      %p90 = scmp.eq.s32.totalorder %s24, 1
      %p91 = por %p89, %p90
      %p92 = scmp.ne.s32.totalorder %s81, %s82
      %p93 = scmp.eq.s32.totalorder %s24, 0
      %p94 = por %p92, %p93
      %p95 = scmp.ne.s32.totalorder %s81, %s82
      %p96 = scmp.eq.s32.totalorder %s25, 1
      %p97 = por %p95, %p96
      %p99 = scmp.ne.s32.totalorder %s82, %s98
      %p100 = scmp.eq.s32.totalorder %s25, 0
      %p101 = por %p99, %p100
      %s103 = sadd.s32 %s102, 1
      %p106 = scmp.eq.s32.totalorder %s19, 1
      %p107 = scmp.ne.s32.totalorder %s102, %s104
      %p108 = scmp.eq.s32.totalorder %s19, 0
      %p109 = por %p107, %p108
      %p110 = scmp.ne.s32.totalorder %s102, %s104
      %p111 = scmp.eq.s32.totalorder %s24, 1
      %p112 = por %p110, %p111
      %p113 = scmp.ne.s32.totalorder %s104, %s105
      %p114 = scmp.eq.s32.totalorder %s24, 0
      %p115 = por %p113, %p114
      %p116 = scmp.ne.s32.totalorder %s104, %s105
      %p117 = scmp.eq.s32.totalorder %s25, 1
      %p118 = por %p116, %p117
      %p120 = scmp.ne.s32.totalorder %s105, %s119
      %p121 = scmp.eq.s32.totalorder %s25, 0
      %p122 = por %p120, %p121
      %s124 = sadd.s32 %s123, 1
      %p127 = scmp.eq.s32.totalorder %s19, 1
      %p128 = scmp.ne.s32.totalorder %s123, %s125
      %p129 = scmp.eq.s32.totalorder %s19, 0
      %p130 = por %p128, %p129
      %p131 = scmp.ne.s32.totalorder %s123, %s125
      %p132 = scmp.eq.s32.totalorder %s24, 1
      %p133 = por %p131, %p132
      %p134 = scmp.ne.s32.totalorder %s125, %s126
      %p135 = scmp.eq.s32.totalorder %s24, 0
      %p136 = por %p134, %p135
      %p137 = scmp.ne.s32.totalorder %s125, %s126
      %p138 = scmp.eq.s32.totalorder %s25, 1
      %p139 = por %p137, %p138
      %p141 = scmp.ne.s32.totalorder %s126, %s140
      %p142 = scmp.eq.s32.totalorder %s25, 0
      %p143 = por %p141, %p142
      %s144 = ssub.s32 %s26, %s45
      %s145 = ssub.s32 %s27, %s41
      %s146 = sor.u32 %s144, %s145
      %p147 = scmp.eq.s32.totalorder %s146, 0
      %s149 = sadd.s32 %s148, 1
      %s150 = scalar_select %p147, %s148, %s149
      %p153 = pneg %p147
      %p154 = scmp.eq.s32.totalorder %s19, 1
      %p155 = por %p153, %p154
      %p156 = scmp.ne.s32.totalorder %s148, %s151
      %p157 = scmp.eq.s32.totalorder %s19, 0
      %p158 = por %p156, %p157
      %p159 = scmp.ne.s32.totalorder %s148, %s151
      %p160 = scmp.eq.s32.totalorder %s24, 1
      %p161 = por %p159, %p160
      %p162 = scmp.ne.s32.totalorder %s151, %s152
      %p163 = scmp.eq.s32.totalorder %s24, 0
      %p164 = por %p162, %p163
      %p165 = scmp.ne.s32.totalorder %s151, %s152
      %p166 = scmp.eq.s32.totalorder %s25, 1
      %p167 = por %p165, %p166
      %p169 = scmp.ne.s32.totalorder %s152, %s168
      %p170 = scmp.eq.s32.totalorder %s25, 0
      %p171 = por %p169, %p170
      %p172 = scmp.le.s32.totalorder 1, %s19
      %p173 = scmp.lt.s32.totalorder %s19, 3
      %p174 = pnand %p172, %p173
      %p175 = pneg %p174
      // Predicated region
      $region9: #{tpu_custom_call.1} parent=5 // pred_check
        _
      $region10: #{tpu_custom_call.1} parent=5 // pred_check_branch
        %177 = sbr.rel (%p174) target = $region12
      $region11: #{tpu_custom_call.1} parent=5 // pred_region
        %s178 = ssub.s32 %s19, 1
        // Predicated region
        $region13: #{tpu_custom_call.1} parent=11 // pred_check
          %p179 = pneg %p115
        $region14: #{tpu_custom_call.1} parent=11 // pred_check_branch
          %181 = sbr.rel (%p179) target = $region16
        $region15: #{tpu_custom_call.1} parent=11 // pred_region
          %s183 = ssub.s32 1024, 1024
          %184 = vsyncadd [#allocation7], %s183
          %s185 = sshll.u32 [#allocation8], 4
          %s186 = int_to_ptr.vmem [resolvable:$true] %s185
          %191 = dma.hbm_to_vmem [thread:$0]  %s2, 1024, %s186, [#allocation7], 64, 64, 4
        $region16: #{tpu_custom_call.1} parent=11 // pred_fallthru
          _
        // Predicated region
        $region17: #{tpu_custom_call.1} parent=11 // pred_check
          %p192 = pneg %p136
        $region18: #{tpu_custom_call.1} parent=11 // pred_check_branch
          %194 = sbr.rel (%p192) target = $region20
        $region19: #{tpu_custom_call.1} parent=11 // pred_region
          _
        $region20: #{tpu_custom_call.1} parent=11 // pred_fallthru
          _
      $region12: #{tpu_custom_call.1} parent=5 // pred_fallthru
        _
      %p195 = scmp.lt.s32.totalorder %s19, 2
      // Predicated region
      $region21: #{tpu_custom_call.1} parent=5 // pred_check
        %p196 = pneg %p195
      $region22: #{tpu_custom_call.1} parent=5 // pred_check_branch
        %198 = sbr.rel (%p196) target = $region24
      $region23: #{tpu_custom_call.1} parent=5 // pred_region
        // Predicated region
        $region25: #{tpu_custom_call.1} parent=23 // pred_check
          %p199 = pneg %p62
        $region26: #{tpu_custom_call.1} parent=23 // pred_check_branch
          %201 = sbr.rel (%p199) target = $region28
        $region27: #{tpu_custom_call.1} parent=23 // pred_region
          %s202 = sand.u32 %s52, 1
          %s203 = scalar_lea.sflag [#allocation4], %s202
          %s204 = sand.u32 %s52, 1
          %s205 = smul.addr %s204, 128
          %s206 = scalar_lea.vmem [#allocation3], %s205
          %s207 = smul.u32 16, %s27
          %s209 = ssub.s32 2048, 2048
          %210 = vsyncadd %s203, %s209
          %s211 = sadd.s32 %s28, %s207
          %s212 = smul.addr %s26, 16
          %s213 = sadd.s32 %s211, %s212
          %s214 = smul.addr %s213, 128
          %s215 = scalar_lea.hbm %s0, %s214
          %s216 = sshll.u32 %s206, 4
          %s217 = int_to_ptr.vmem [resolvable:$true] %s216
          %222 = dma.hbm_to_vmem [thread:$0]  %s215, 2048, %s217, %s203, 128, 128, 8
        $region28: #{tpu_custom_call.1} parent=23 // pred_fallthru
          _
        // Predicated region
        $region29: #{tpu_custom_call.1} parent=23 // pred_check
          %p223 = pneg %p88
        $region30: #{tpu_custom_call.1} parent=23 // pred_check_branch
          %225 = sbr.rel (%p223) target = $region32
        $region31: #{tpu_custom_call.1} parent=23 // pred_region
          %s226 = sand.u32 %s19, 1
          %s227 = scalar_lea.sflag [#allocation7], %s226
          %s228 = sand.u32 %s78, 1
          %s229 = smul.addr %s228, 64
          %s230 = scalar_lea.vmem [#allocation6], %s229
          %s232 = ssub.s32 1024, 1024
          %233 = vsyncadd %s227, %s232
          %s234 = smul.addr %s26, 16
          %s235 = smul.addr %s234, 64
          %s236 = scalar_lea.hbm %s1, %s235
          %s237 = sshll.u32 %s230, 4
          %s238 = int_to_ptr.vmem [resolvable:$true] %s237
          %243 = dma.hbm_to_vmem [thread:$0]  %s236, 1024, %s238, %s227, 64, 64, 4
        $region32: #{tpu_custom_call.1} parent=23 // pred_fallthru
          _
      $region24: #{tpu_custom_call.1} parent=5 // pred_fallthru
        _
      %p244 = scmp.le.s32.totalorder 1, %s19
      %p245 = scmp.lt.s32.totalorder %s19, 3
      %p246 = pnand %p244, %p245
      %p247 = pneg %p246
      // Predicated region
      $region33: #{tpu_custom_call.1} parent=5 // pred_check
        _
      $region34: #{tpu_custom_call.1} parent=5 // pred_check_branch
        %249 = sbr.rel (%p246) target = $region36
      $region35: #{tpu_custom_call.1} parent=5 // pred_region
        %s250 = ssub.s32 %s19, 1
        %s251 = sand.u32 %s55, 1
        %s252 = scalar_lea.sflag [#allocation4], %s251
        %s253 = sand.u32 %s55, 1
        %s254 = smul.addr %s253, 128
        %s255 = scalar_lea.vmem [#allocation3], %s254
        // Predicated region
        $region37: #{tpu_custom_call.1} parent=35 // pred_check
          %p256 = pneg %p68
        $region38: #{tpu_custom_call.1} parent=35 // pred_check_branch
          %258 = sbr.rel (%p256) target = $region40
        $region39: #{tpu_custom_call.1} parent=35 // pred_region
          %259 = dma.done %s252, 2048
        $region40: #{tpu_custom_call.1} parent=35 // pred_fallthru
          _
        %s260 = sand.u32 %s24, 1
        %s261 = scalar_lea.sflag [#allocation7], %s260
        %s262 = sand.u32 %s81, 1
        %s263 = smul.addr %s262, 64
        %s264 = scalar_lea.vmem [#allocation6], %s263
        // Predicated region
        $region41: #{tpu_custom_call.1} parent=35 // pred_check
          %p265 = pneg %p94
        $region42: #{tpu_custom_call.1} parent=35 // pred_check_branch
          %267 = sbr.rel (%p265) target = $region44
        $region43: #{tpu_custom_call.1} parent=35 // pred_region
          %268 = dma.done %s261, 1024
        $region44: #{tpu_custom_call.1} parent=35 // pred_fallthru
          _
        // Predicated region
        $region45: #{tpu_custom_call.1} parent=35 // pred_check
          %p269 = pneg %p115
        $region46: #{tpu_custom_call.1} parent=35 // pred_check_branch
          %271 = sbr.rel (%p269) target = $region48
        $region47: #{tpu_custom_call.1} parent=35 // pred_region
          %272 = dma.done [#allocation7], 1024
        $region48: #{tpu_custom_call.1} parent=35 // pred_fallthru
          _
        %s273 = sand.u32 %s55, 1
        %s274 = scalar_lea.sflag [#allocation4], %s273
        %s275 = sand.u32 %s55, 1
        %s276 = smul.addr %s275, 128
        %s277 = scalar_lea.vmem [#allocation3], %s276
        %p278 = pneg %p68
        %p279 = pneg %p65
        %s280 = sand.u32 %s24, 1
        %s281 = scalar_lea.sflag [#allocation7], %s280
        %s282 = sand.u32 %s81, 1
        %s283 = smul.addr %s282, 64
        %s284 = scalar_lea.vmem [#allocation6], %s283
        %p285 = pneg %p94
        %p286 = pneg %p91
        %p287 = pneg %p115
        %p288 = pneg %p112
        %p289 = pneg %p136
        %p290 = pneg %p133
        %p291 = pneg %p164
        %p292 = pneg %p161
        %s293 = sand.u32 %s151, 1
        %s294 = scalar_lea.sflag [#allocation5], %s293
        %s295 = sand.u32 %s151, 1
        %s296 = smul.addr %s295, 128
        %s297 = scalar_lea.vmem [#allocation9], %s296
        %s298 = smul.u32 16, %s30
        %s299 = smul.u32 16, %s30
        %p301 = scmp.eq.s32.totalorder %s31, 0
        // Predicated region
        $region49: #{tpu_custom_call.1} parent=35 // pred_check
          %p302 = pneg %p301
        $region50: #{tpu_custom_call.1} parent=35 // pred_check_branch
          %304 = sbr.rel (%p302) target = $region52
        $region51: #{tpu_custom_call.1} parent=35 // pred_region
          %305 = vst [vmem:[#allocation2] sm:$0xff] 0.0
          %306 = vst [vmem:[#allocation2 + $0x8] sm:$0xff] 0.0
          %307 = vst [vmem:[#allocation2 + $0x10] sm:$0xff] 0.0
          %308 = vst [vmem:[#allocation2 + $0x18] sm:$0xff] 0.0
          %309 = vst [vmem:[#allocation2 + $0x20] sm:$0xff] 0.0
          %310 = vst [vmem:[#allocation2 + $0x28] sm:$0xff] 0.0
          %311 = vst [vmem:[#allocation2 + $0x30] sm:$0xff] 0.0
          %312 = vst [vmem:[#allocation2 + $0x38] sm:$0xff] 0.0
          %313 = vst [vmem:[#allocation2 + $0x40] sm:$0xff] 0.0
          %314 = vst [vmem:[#allocation2 + $0x48] sm:$0xff] 0.0
          %315 = vst [vmem:[#allocation2 + $0x50] sm:$0xff] 0.0
          %316 = vst [vmem:[#allocation2 + $0x58] sm:$0xff] 0.0
          %317 = vst [vmem:[#allocation2 + $0x60] sm:$0xff] 0.0
          %318 = vst [vmem:[#allocation2 + $0x68] sm:$0xff] 0.0
          %319 = vst [vmem:[#allocation2 + $0x70] sm:$0xff] 0.0
          %320 = vst [vmem:[#allocation2 + $0x78] sm:$0xff] 0.0
        $region52: #{tpu_custom_call.1} parent=35 // pred_fallthru
          _
        %s321 = smul.u32 %s31, 128
        %s322 = sshra.s32 %s321, 3
        %s323 = sand.u32 %s321, 7
        %s324 = smul.addr %s322, 4
        %s325 = scalar_lea.vmem %s264, %s324 [#allocation6]
        %v326 = vld [vmem:[%s325] sm:$0xf]
        %v327 = vld [vmem:[%s325 + $0x4] sm:$0xf]
        %v328 = vld [vmem:[%s325 + $0x8] sm:$0xf]
        %v329 = vld [vmem:[%s325 + $0xc] sm:$0xf]
        %v330 = vld [vmem:[%s325 + $0x10] sm:$0xf]
        %v331 = vld [vmem:[%s325 + $0x14] sm:$0xf]
        %v332 = vld [vmem:[%s325 + $0x18] sm:$0xf]
        %v333 = vld [vmem:[%s325 + $0x1c] sm:$0xf]
        %v334 = vld [vmem:[%s325 + $0x20] sm:$0xf]
        %v335 = vld [vmem:[%s325 + $0x24] sm:$0xf]
        %v336 = vld [vmem:[%s325 + $0x28] sm:$0xf]
        %v337 = vld [vmem:[%s325 + $0x2c] sm:$0xf]
        %v338 = vld [vmem:[%s325 + $0x30] sm:$0xf]
        %v339 = vld [vmem:[%s325 + $0x34] sm:$0xf]
        %v340 = vld [vmem:[%s325 + $0x38] sm:$0xf]
        %v341 = vld [vmem:[%s325 + $0x3c] sm:$0xf]
        %v342 = vld [vmem:[#allocation2] sm:$0xff]
        %v343 = vld [vmem:[#allocation2 + $0x8] sm:$0xff]
        %v344 = vld [vmem:[#allocation2 + $0x10] sm:$0xff]
        %v345 = vld [vmem:[#allocation2 + $0x18] sm:$0xff]
        %v346 = vld [vmem:[#allocation2 + $0x20] sm:$0xff]
        %v347 = vld [vmem:[#allocation2 + $0x28] sm:$0xff]
        %v348 = vld [vmem:[#allocation2 + $0x30] sm:$0xff]
        %v349 = vld [vmem:[#allocation2 + $0x38] sm:$0xff]
        %v350 = vld [vmem:[#allocation2 + $0x40] sm:$0xff]
        %v351 = vld [vmem:[#allocation2 + $0x48] sm:$0xff]
        %v352 = vld [vmem:[#allocation2 + $0x50] sm:$0xff]
        %v353 = vld [vmem:[#allocation2 + $0x58] sm:$0xff]
        %v354 = vld [vmem:[#allocation2 + $0x60] sm:$0xff]
        %v355 = vld [vmem:[#allocation2 + $0x68] sm:$0xff]
        %v356 = vld [vmem:[#allocation2 + $0x70] sm:$0xff]
        %v357 = vld [vmem:[#allocation2 + $0x78] sm:$0xff]
        %v358 = vld [vmem:[%s255] sm:$0xff]
        %v359 = vld [vmem:[%s255 + $0x8] sm:$0xff]
        %v360 = vld [vmem:[%s255 + $0x10] sm:$0xff]
        %v361 = vld [vmem:[%s255 + $0x18] sm:$0xff]
        %v362 = vld [vmem:[%s255 + $0x20] sm:$0xff]
        %v363 = vld [vmem:[%s255 + $0x28] sm:$0xff]
        %v364 = vld [vmem:[%s255 + $0x30] sm:$0xff]
        %v365 = vld [vmem:[%s255 + $0x38] sm:$0xff]
        %v366 = vld [vmem:[%s255 + $0x40] sm:$0xff]
        %v367 = vld [vmem:[%s255 + $0x48] sm:$0xff]
        %v368 = vld [vmem:[%s255 + $0x50] sm:$0xff]
        %v369 = vld [vmem:[%s255 + $0x58] sm:$0xff]
        %v370 = vld [vmem:[%s255 + $0x60] sm:$0xff]
        %v371 = vld [vmem:[%s255 + $0x68] sm:$0xff]
        %v372 = vld [vmem:[%s255 + $0x70] sm:$0xff]
        %v373 = vld [vmem:[%s255 + $0x78] sm:$0xff]
        %v374 = vpack.c.bf16 %v359, %v358
        %v375 = vpack.c.bf16 %v361, %v360
        %v376 = vpack.c.bf16 %v363, %v362
        %v377 = vpack.c.bf16 %v365, %v364
        %v378 = vpack.c.bf16 %v367, %v366
        %v379 = vpack.c.bf16 %v369, %v368
        %v380 = vpack.c.bf16 %v371, %v370
        %v381 = vpack.c.bf16 %v373, %v372
        %v398 = vunpack.c.l.b16 %v326
        %v399 = vunpack.c.l.b16 %v327
        %v400 = vunpack.c.l.b16 %v328
        %v401 = vunpack.c.l.b16 %v329
        %v402 = vunpack.c.l.b16 %v330
        %v403 = vunpack.c.l.b16 %v331
        %v404 = vunpack.c.l.b16 %v332
        %v405 = vunpack.c.l.b16 %v333
        %v406 = vunpack.c.l.b16 %v334
        %v407 = vunpack.c.l.b16 %v335
        %v408 = vunpack.c.l.b16 %v336
        %v409 = vunpack.c.l.b16 %v337
        %v410 = vunpack.c.l.b16 %v338
        %v411 = vunpack.c.l.b16 %v339
        %v412 = vunpack.c.l.b16 %v340
        %v413 = vunpack.c.l.b16 %v341
        %v414 = vpack.c.b16 %v399, %v398
        %v415 = vpack.c.b16 %v401, %v400
        %v416 = vpack.c.b16 %v403, %v402
        %v417 = vpack.c.b16 %v405, %v404
        %v418 = vpack.c.b16 %v407, %v406
        %v419 = vpack.c.b16 %v409, %v408
        %v420 = vpack.c.b16 %v411, %v410
        %v421 = vpack.c.b16 %v413, %v412
        %430 = vmatprep.subr.bf16.mxu0 0
        %431 = vmatpush1.bf16.msra.mxu0 %v421
        %432 = vmatprep.subr.bf16.mxu0 0
        %433 = vmatpush1.bf16.msra.mxu0 %v420
        %434 = vmatprep.subr.bf16.mxu0 0
        %435 = vmatpush1.bf16.msra.mxu0 %v419
        %436 = vmatprep.subr.bf16.mxu0 0
        %437 = vmatpush1.bf16.msra.mxu0 %v418
        %438 = vmatprep.subr.bf16.mxu0 0
        %439 = vmatpush1.bf16.msra.mxu0 %v417
        %440 = vmatprep.subr.bf16.mxu0 0
        %441 = vmatpush1.bf16.msra.mxu0 %v416
        %442 = vmatprep.subr.bf16.mxu0 0
        %443 = vmatpush1.bf16.msra.mxu0 %v415
        %444 = vmatprep.subr.bf16.mxu0 0
        %445 = vmatpush1.bf16.msra.mxu0 %v414
        %446 = vmatprep.subr.bf16.mxu0 0
        %447 = vmatpush2.bf16.msra.mxu0 0
        %448 = vmatprep.subr.bf16.mxu0 0
        %449 = vmatpush2.bf16.msra.mxu0 0
        %450 = vmatprep.subr.bf16.mxu0 0
        %451 = vmatpush2.bf16.msra.mxu0 0
        %452 = vmatprep.subr.bf16.mxu0 0
        %453 = vmatpush2.bf16.msra.mxu0 0
        %454 = vmatprep.subr.bf16.mxu0 0
        %455 = vmatpush2.bf16.msra.mxu0 0
        %456 = vmatprep.subr.bf16.mxu0 0
        %457 = vmatpush2.bf16.msra.mxu0 0
        %458 = vmatprep.subr.bf16.mxu0 0
        %459 = vmatpush2.bf16.msra.mxu0 0
        %460 = vmatprep.subr.bf16.mxu0 0
        %461 = vmatpush2.bf16.msra.mxu0 0
        %462 = vmatprep.mubr.bf16.mxu0 0
        %463 = vmatmul.mubr.bf16.gmra.mxu0 %v374
        %v464 = vpop.f32.mrf.mxu0
        %v465 = vadd.f32 0.0, %v464
        %v466 = vpop.f32.mrf.mxu0
        %v467 = vpop.f32.mrf.mxu0
        %v468 = vadd.f32 0.0, %v467
        %v469 = vpop.f32.mrf.mxu0
        %470 = vmatprep.mubr.bf16.mxu0 0
        %471 = vmatmul.mubr.bf16.gmra.mxu0 %v375
        %v472 = vpop.f32.mrf.mxu0
        %v473 = vadd.f32 0.0, %v472
        %v474 = vpop.f32.mrf.mxu0
        %v475 = vpop.f32.mrf.mxu0
        %v476 = vadd.f32 0.0, %v475
        %v477 = vpop.f32.mrf.mxu0
        %478 = vmatprep.mubr.bf16.mxu0 0
        %479 = vmatmul.mubr.bf16.gmra.mxu0 %v376
        %v480 = vpop.f32.mrf.mxu0
        %v481 = vadd.f32 0.0, %v480
        %v482 = vpop.f32.mrf.mxu0
        %v483 = vpop.f32.mrf.mxu0
        %v484 = vadd.f32 0.0, %v483
        %v485 = vpop.f32.mrf.mxu0
        %486 = vmatprep.mubr.bf16.mxu0 0
        %487 = vmatmul.mubr.bf16.gmra.mxu0 %v377
        %v488 = vpop.f32.mrf.mxu0
        %v489 = vadd.f32 0.0, %v488
        %v490 = vpop.f32.mrf.mxu0
        %v491 = vpop.f32.mrf.mxu0
        %v492 = vadd.f32 0.0, %v491
        %v493 = vpop.f32.mrf.mxu0
        %494 = vmatprep.mubr.bf16.mxu0 0
        %495 = vmatmul.mubr.bf16.gmra.mxu0 %v378
        %v496 = vpop.f32.mrf.mxu0
        %v497 = vadd.f32 0.0, %v496
        %v498 = vpop.f32.mrf.mxu0
        %v499 = vpop.f32.mrf.mxu0
        %v500 = vadd.f32 0.0, %v499
        %v501 = vpop.f32.mrf.mxu0
        %502 = vmatprep.mubr.bf16.mxu0 0
        %503 = vmatmul.mubr.bf16.gmra.mxu0 %v379
        %v504 = vpop.f32.mrf.mxu0
        %v505 = vadd.f32 0.0, %v504
        %v506 = vpop.f32.mrf.mxu0
        %v507 = vpop.f32.mrf.mxu0
        %v508 = vadd.f32 0.0, %v507
        %v509 = vpop.f32.mrf.mxu0
        %510 = vmatprep.mubr.bf16.mxu0 0
        %511 = vmatmul.mubr.bf16.gmra.mxu0 %v380
        %v512 = vpop.f32.mrf.mxu0
        %v513 = vadd.f32 0.0, %v512
        %v514 = vpop.f32.mrf.mxu0
        %v515 = vpop.f32.mrf.mxu0
        %v516 = vadd.f32 0.0, %v515
        %v517 = vpop.f32.mrf.mxu0
        %518 = vmatprep.mubr.bf16.mxu0 0
        %519 = vmatmul.mubr.bf16.gmra.mxu0 %v381
        %v520 = vpop.f32.mrf.mxu0
        %v521 = vadd.f32 0.0, %v520
        %v522 = vpop.f32.mrf.mxu0
        %v523 = vpop.f32.mrf.mxu0
        %v524 = vadd.f32 0.0, %v523
        %v525 = vpop.f32.mrf.mxu0
        %526 = vdwg.mxu0
        %v527 = vadd.f32 %v342, %v465
        %v528 = vadd.f32 %v343, %v468
        %v529 = vadd.f32 %v344, %v473
        %v530 = vadd.f32 %v345, %v476
        %v531 = vadd.f32 %v346, %v481
        %v532 = vadd.f32 %v347, %v484
        %v533 = vadd.f32 %v348, %v489
        %v534 = vadd.f32 %v349, %v492
        %v535 = vadd.f32 %v350, %v497
        %v536 = vadd.f32 %v351, %v500
        %v537 = vadd.f32 %v352, %v505
        %v538 = vadd.f32 %v353, %v508
        %v539 = vadd.f32 %v354, %v513
        %v540 = vadd.f32 %v355, %v516
        %v541 = vadd.f32 %v356, %v521
        %v542 = vadd.f32 %v357, %v524
        %543 = vst [vmem:[#allocation2] sm:$0xff] %v527
        %544 = vst [vmem:[#allocation2 + $0x8] sm:$0xff] %v528
        %545 = vst [vmem:[#allocation2 + $0x10] sm:$0xff] %v529
        %546 = vst [vmem:[#allocation2 + $0x18] sm:$0xff] %v530
        %547 = vst [vmem:[#allocation2 + $0x20] sm:$0xff] %v531
        %548 = vst [vmem:[#allocation2 + $0x28] sm:$0xff] %v532
        %549 = vst [vmem:[#allocation2 + $0x30] sm:$0xff] %v533
        %550 = vst [vmem:[#allocation2 + $0x38] sm:$0xff] %v534
        %551 = vst [vmem:[#allocation2 + $0x40] sm:$0xff] %v535
        %552 = vst [vmem:[#allocation2 + $0x48] sm:$0xff] %v536
        %553 = vst [vmem:[#allocation2 + $0x50] sm:$0xff] %v537
        %554 = vst [vmem:[#allocation2 + $0x58] sm:$0xff] %v538
        %555 = vst [vmem:[#allocation2 + $0x60] sm:$0xff] %v539
        %556 = vst [vmem:[#allocation2 + $0x68] sm:$0xff] %v540
        %557 = vst [vmem:[#allocation2 + $0x70] sm:$0xff] %v541
        %558 = vst [vmem:[#allocation2 + $0x78] sm:$0xff] %v542
        // Predicated region
        $region53: #{tpu_custom_call.1} parent=35 // pred_check
          %p559 = pneg %p301
        $region54: #{tpu_custom_call.1} parent=35 // pred_check_branch
          %561 = sbr.rel (%p559) target = $region56
        $region55: #{tpu_custom_call.1} parent=35 // pred_region
          %v562 = vld [vmem:[#allocation2] sm:$0xff]
          %v563 = vld [vmem:[#allocation2 + $0x8] sm:$0xff]
          %v564 = vld [vmem:[#allocation2 + $0x10] sm:$0xff]
          %v565 = vld [vmem:[#allocation2 + $0x18] sm:$0xff]
          %v566 = vld [vmem:[#allocation2 + $0x20] sm:$0xff]
          %v567 = vld [vmem:[#allocation2 + $0x28] sm:$0xff]
          %v568 = vld [vmem:[#allocation2 + $0x30] sm:$0xff]
          %v569 = vld [vmem:[#allocation2 + $0x38] sm:$0xff]
          %v570 = vld [vmem:[#allocation2 + $0x40] sm:$0xff]
          %v571 = vld [vmem:[#allocation2 + $0x48] sm:$0xff]
          %v572 = vld [vmem:[#allocation2 + $0x50] sm:$0xff]
          %v573 = vld [vmem:[#allocation2 + $0x58] sm:$0xff]
          %v574 = vld [vmem:[#allocation2 + $0x60] sm:$0xff]
          %v575 = vld [vmem:[#allocation2 + $0x68] sm:$0xff]
          %v576 = vld [vmem:[#allocation2 + $0x70] sm:$0xff]
          %v577 = vld [vmem:[#allocation2 + $0x78] sm:$0xff]
          %v578 = vpack.c.bf16 %v563, %v562
          %v579 = vpack.c.bf16 %v565, %v564
          %v580 = vpack.c.bf16 %v567, %v566
          %v581 = vpack.c.bf16 %v569, %v568
          %v582 = vpack.c.bf16 %v571, %v570
          %v583 = vpack.c.bf16 %v573, %v572
          %v584 = vpack.c.bf16 %v575, %v574
          %v585 = vpack.c.bf16 %v577, %v576
          %v586 = vld [vmem:[#allocation8] sm:$0xf]
          %v587 = vld [vmem:[#allocation8 + $0x4] sm:$0xf]
          %v588 = vld [vmem:[#allocation8 + $0x8] sm:$0xf]
          %v589 = vld [vmem:[#allocation8 + $0xc] sm:$0xf]
          %v590 = vld [vmem:[#allocation8 + $0x10] sm:$0xf]
          %v591 = vld [vmem:[#allocation8 + $0x14] sm:$0xf]
          %v592 = vld [vmem:[#allocation8 + $0x18] sm:$0xf]
          %v593 = vld [vmem:[#allocation8 + $0x1c] sm:$0xf]
          %v594 = vld [vmem:[#allocation8 + $0x20] sm:$0xf]
          %v595 = vld [vmem:[#allocation8 + $0x24] sm:$0xf]
          %v596 = vld [vmem:[#allocation8 + $0x28] sm:$0xf]
          %v597 = vld [vmem:[#allocation8 + $0x2c] sm:$0xf]
          %v598 = vld [vmem:[#allocation8 + $0x30] sm:$0xf]
          %v599 = vld [vmem:[#allocation8 + $0x34] sm:$0xf]
          %v600 = vld [vmem:[#allocation8 + $0x38] sm:$0xf]
          %v601 = vld [vmem:[#allocation8 + $0x3c] sm:$0xf]
          %v602 = vld [vmem:[%s3] sm:$0x1]
          %v604 = vlaneseq
          %v605 = vshrl.u32 %v604, 7
          %v606 = vsub.s32 0, %v605
          %v607 = vrot.slane %v602, %v606
          %v625 = vunpack.c.l.b16 %v586
          %v626 = vunpack.c.l.b16 %v587
          %v627 = vunpack.c.l.b16 %v588
          %v628 = vunpack.c.l.b16 %v589
          %v629 = vunpack.c.l.b16 %v590
          %v630 = vunpack.c.l.b16 %v591
          %v631 = vunpack.c.l.b16 %v592
          %v632 = vunpack.c.l.b16 %v593
          %v633 = vunpack.c.l.b16 %v594
          %v634 = vunpack.c.l.b16 %v595
          %v635 = vunpack.c.l.b16 %v596
          %v636 = vunpack.c.l.b16 %v597
          %v637 = vunpack.c.l.b16 %v598
          %v638 = vunpack.c.l.b16 %v599
          %v639 = vunpack.c.l.b16 %v600
          %v640 = vunpack.c.l.b16 %v601
          %v641 = vpack.c.b16 %v626, %v625
          %v642 = vpack.c.b16 %v628, %v627
          %v643 = vpack.c.b16 %v630, %v629
          %v644 = vpack.c.b16 %v632, %v631
          %v645 = vpack.c.b16 %v634, %v633
          %v646 = vpack.c.b16 %v636, %v635
          %v647 = vpack.c.b16 %v638, %v637
          %v648 = vpack.c.b16 %v640, %v639
          %657 = vmatprep.subr.bf16.mxu0 0
          %658 = vmatpush1.bf16.msra.mxu0 %v648
          %659 = vmatprep.subr.bf16.mxu0 0
          %660 = vmatpush1.bf16.msra.mxu0 %v647
          %661 = vmatprep.subr.bf16.mxu0 0
          %662 = vmatpush1.bf16.msra.mxu0 %v646
          %663 = vmatprep.subr.bf16.mxu0 0
          %664 = vmatpush1.bf16.msra.mxu0 %v645
          %665 = vmatprep.subr.bf16.mxu0 0
          %666 = vmatpush1.bf16.msra.mxu0 %v644
          %667 = vmatprep.subr.bf16.mxu0 0
          %668 = vmatpush1.bf16.msra.mxu0 %v643
          %669 = vmatprep.subr.bf16.mxu0 0
          %670 = vmatpush1.bf16.msra.mxu0 %v642
          %671 = vmatprep.subr.bf16.mxu0 0
          %672 = vmatpush1.bf16.msra.mxu0 %v641
          %673 = vmatprep.subr.bf16.mxu0 0
          %674 = vmatpush2.bf16.msra.mxu0 0
          %675 = vmatprep.subr.bf16.mxu0 0
          %676 = vmatpush2.bf16.msra.mxu0 0
          %677 = vmatprep.subr.bf16.mxu0 0
          %678 = vmatpush2.bf16.msra.mxu0 0
          %679 = vmatprep.subr.bf16.mxu0 0
          %680 = vmatpush2.bf16.msra.mxu0 0
          %681 = vmatprep.subr.bf16.mxu0 0
          %682 = vmatpush2.bf16.msra.mxu0 0
          %683 = vmatprep.subr.bf16.mxu0 0
          %684 = vmatpush2.bf16.msra.mxu0 0
          %685 = vmatprep.subr.bf16.mxu0 0
          %686 = vmatpush2.bf16.msra.mxu0 0
          %687 = vmatprep.subr.bf16.mxu0 0
          %688 = vmatpush2.bf16.msra.mxu0 0
          %689 = vmatprep.mubr.bf16.mxu0 0
          %690 = vmatmul.mubr.bf16.gmra.mxu0 %v578
          %v691 = vpop.f32.mrf.mxu0
          %v692 = vadd.f32 %v607, %v691
          %v693 = vpop.f32.mrf.mxu0
          %v694 = vpop.f32.mrf.mxu0
          %v695 = vadd.f32 %v607, %v694
          %v696 = vpop.f32.mrf.mxu0
          %697 = vmatprep.mubr.bf16.mxu0 0
          %698 = vmatmul.mubr.bf16.gmra.mxu0 %v579
          %v699 = vpop.f32.mrf.mxu0
          %v700 = vadd.f32 %v607, %v699
          %v701 = vpop.f32.mrf.mxu0
          %v702 = vpop.f32.mrf.mxu0
          %v703 = vadd.f32 %v607, %v702
          %v704 = vpop.f32.mrf.mxu0
          %705 = vmatprep.mubr.bf16.mxu0 0
          %706 = vmatmul.mubr.bf16.gmra.mxu0 %v580
          %v707 = vpop.f32.mrf.mxu0
          %v708 = vadd.f32 %v607, %v707
          %v709 = vpop.f32.mrf.mxu0
          %v710 = vpop.f32.mrf.mxu0
          %v711 = vadd.f32 %v607, %v710
          %v712 = vpop.f32.mrf.mxu0
          %713 = vmatprep.mubr.bf16.mxu0 0
          %714 = vmatmul.mubr.bf16.gmra.mxu0 %v581
          %v715 = vpop.f32.mrf.mxu0
          %v716 = vadd.f32 %v607, %v715
          %v717 = vpop.f32.mrf.mxu0
          %v718 = vpop.f32.mrf.mxu0
          %v719 = vadd.f32 %v607, %v718
          %v720 = vpop.f32.mrf.mxu0
          %721 = vmatprep.mubr.bf16.mxu0 0
          %722 = vmatmul.mubr.bf16.gmra.mxu0 %v582
          %v723 = vpop.f32.mrf.mxu0
          %v724 = vadd.f32 %v607, %v723
          %v725 = vpop.f32.mrf.mxu0
          %v726 = vpop.f32.mrf.mxu0
          %v727 = vadd.f32 %v607, %v726
          %v728 = vpop.f32.mrf.mxu0
          %729 = vmatprep.mubr.bf16.mxu0 0
          %730 = vmatmul.mubr.bf16.gmra.mxu0 %v583
          %v731 = vpop.f32.mrf.mxu0
          %v732 = vadd.f32 %v607, %v731
          %v733 = vpop.f32.mrf.mxu0
          %v734 = vpop.f32.mrf.mxu0
          %v735 = vadd.f32 %v607, %v734
          %v736 = vpop.f32.mrf.mxu0
          %737 = vmatprep.mubr.bf16.mxu0 0
          %738 = vmatmul.mubr.bf16.gmra.mxu0 %v584
          %v739 = vpop.f32.mrf.mxu0
          %v740 = vadd.f32 %v607, %v739
          %v741 = vpop.f32.mrf.mxu0
          %v742 = vpop.f32.mrf.mxu0
          %v743 = vadd.f32 %v607, %v742
          %v744 = vpop.f32.mrf.mxu0
          %745 = vmatprep.mubr.bf16.mxu0 0
          %746 = vmatmul.mubr.bf16.gmra.mxu0 %v585
          %v747 = vpop.f32.mrf.mxu0
          %v748 = vadd.f32 %v607, %v747
          %v749 = vpop.f32.mrf.mxu0
          %v750 = vpop.f32.mrf.mxu0
          %v751 = vadd.f32 %v607, %v750
          %v752 = vpop.f32.mrf.mxu0
          %753 = vdwg.mxu0
          %754 = vst [vmem:[%s297] sm:$0xff] %v692
          %755 = vst [vmem:[%s297 + $0x8] sm:$0xff] %v695
          %756 = vst [vmem:[%s297 + $0x10] sm:$0xff] %v700
          %757 = vst [vmem:[%s297 + $0x18] sm:$0xff] %v703
          %758 = vst [vmem:[%s297 + $0x20] sm:$0xff] %v708
          %759 = vst [vmem:[%s297 + $0x28] sm:$0xff] %v711
          %760 = vst [vmem:[%s297 + $0x30] sm:$0xff] %v716
          %761 = vst [vmem:[%s297 + $0x38] sm:$0xff] %v719
          %762 = vst [vmem:[%s297 + $0x40] sm:$0xff] %v724
          %763 = vst [vmem:[%s297 + $0x48] sm:$0xff] %v727
          %764 = vst [vmem:[%s297 + $0x50] sm:$0xff] %v732
          %765 = vst [vmem:[%s297 + $0x58] sm:$0xff] %v735
          %766 = vst [vmem:[%s297 + $0x60] sm:$0xff] %v740
          %767 = vst [vmem:[%s297 + $0x68] sm:$0xff] %v743
          %768 = vst [vmem:[%s297 + $0x70] sm:$0xff] %v748
          %769 = vst [vmem:[%s297 + $0x78] sm:$0xff] %v751
        $region56: #{tpu_custom_call.1} parent=35 // pred_fallthru
          _
        %s770 = sand.u32 %s151, 1
        %s771 = scalar_lea.sflag [#allocation5], %s770
        %s772 = sand.u32 %s151, 1
        %s773 = smul.addr %s772, 128
        %s774 = scalar_lea.vmem [#allocation9], %s773
        // Predicated region
        $region57: #{tpu_custom_call.1} parent=35 // pred_check
          %p775 = pneg %p161
        $region58: #{tpu_custom_call.1} parent=35 // pred_check_branch
          %777 = sbr.rel (%p775) target = $region60
        $region59: #{tpu_custom_call.1} parent=35 // pred_region
          %s778 = smul.u32 16, %s30
          %s780 = ssub.s32 2048, 2048
          %781 = vsyncadd %s771, %s780
          %s782 = smul.addr %s29, 16
          %s783 = sadd.s32 %s778, %s782
          %s784 = smul.addr %s783, 128
          %s785 = scalar_lea.hbm %s4, %s784
          %s786 = sshll.u32 %s774, 4
          %s787 = int_to_ptr.vmem [resolvable:$true] %s786
          %792 = dma.vmem_to_hbm [thread:$0]  %s787, 2048, %s785, %s771, 128, 128, 8
        $region60: #{tpu_custom_call.1} parent=35 // pred_fallthru
          _
      $region36: #{tpu_custom_call.1} parent=5 // pred_fallthru
        _
      %p793 = scmp.le.s32.totalorder 2, %s19
      // Predicated region
      $region61: #{tpu_custom_call.1} parent=5 // pred_check
        %p794 = pneg %p793
      $region62: #{tpu_custom_call.1} parent=5 // pred_check_branch
        %796 = sbr.rel (%p794) target = $region64
      $region63: #{tpu_custom_call.1} parent=5 // pred_region
        %s797 = ssub.s32 %s19, 2
        // Predicated region
        $region65: #{tpu_custom_call.1} parent=63 // pred_check
          %p798 = pneg %p167
        $region66: #{tpu_custom_call.1} parent=63 // pred_check_branch
          %800 = sbr.rel (%p798) target = $region68
        $region67: #{tpu_custom_call.1} parent=63 // pred_region
          %s801 = sand.u32 %s152, 1
          %s802 = scalar_lea.sflag [#allocation5], %s801
          %s803 = sand.u32 %s152, 1
          %s804 = smul.addr %s803, 128
          %s805 = scalar_lea.vmem [#allocation9], %s804
          %806 = dma.done %s802, 2048
        $region68: #{tpu_custom_call.1} parent=63 // pred_fallthru
          _
      $region64: #{tpu_custom_call.1} parent=5 // pred_fallthru
        _
    $region6: #{tpu_custom_call.1} parent=1 // loop_footer
      %s23 = sadd.s32 1, %s19
    $region7: #{tpu_custom_call.1} parent=1 // loop_footer_branch
      %18 = sbr.rel target = $region3
    $region8: #{tpu_custom_call.1} parent=1 // loop_exit
      _
    %807 = vsyncpa [#allocation4], 1
    %s808 = scalar_lea.sflag [#allocation4], 1
    %809 = vsyncpa %s808, 1
    %810 = vsyncpa [#allocation7], 1
    %s811 = scalar_lea.sflag [#allocation7], 1
    %812 = vsyncpa %s811, 1
    %813 = vsyncpa [#allocation5], 1
    %s814 = scalar_lea.sflag [#allocation5], 1
    %815 = vsyncpa %s814, 1

// kernel: tpu_custom_call.1
$region0: #{tpu_custom_call.1}
  #allocation0 [shape = 'u32[]', space=smem, size = 0x4, offset = 0x4, fixed_abs, tag = 'smem constant byte address 0x4 - core index']
  #allocation1 [shape = 'u32[144,128]{1,0:T(1,128)}', space=vmem, size = 0x12000, scoped, tag = 'internal scratch']
  #allocation2 [shape = 'f32[128,128]{1,0:T(8,128)}', space=vmem, size = 0x10000, scoped, tag = 'scratch operand']
  %s0 = inlined_call_operand.hbm [shape: f32[2,128,128], index: 0, kind: input, shape index: {}]
  %s1 = inlined_call_operand.hbm [shape: bf16[2,128,128], index: 1, kind: input, shape index: {}]
  %s2 = inlined_call_operand.hbm [shape: bf16[128,128], index: 2, kind: input, shape index: {}]
  %s3 = inlined_call_operand.vmem [shape: f32[1,128], index: 3, kind: input, shape index: {}]
  %s4 = inlined_call_operand.hbm [shape: f32[2,128,128], index: 4, kind: output, shape index: {}]
  %s5 = sld [smem:[#allocation0]]
  $region69: #{tpu_custom_call.1} parent=0
    _
  %s7 = ssub.s32 1, %s5
  %s8 = scalar_select 0, %s7, %s5
  $region1: #{tpu_custom_call.1} parent=0
    #allocation3 [shape = 'u8[131072]{0}', space=vmem, size = 0x20000, scoped, tag = 'input window, operand 0']
    #allocation4 [shape = 's32[2]{0}', space=sflag, size = 0x8, scoped, tag = 'scoped memory for tpu_custom_call.1']
    #allocation5 [shape = 's32[2]{0}', space=sflag, size = 0x8, scoped, tag = 'scoped memory for tpu_custom_call.1']
    #allocation6 [shape = 'u8[65536]{0}', space=vmem, size = 0x10000, scoped, tag = 'input window, operand 1']
    #allocation7 [shape = 's32[2]{0}', space=sflag, size = 0x8, scoped, tag = 'scoped memory for tpu_custom_call.1']
    #allocation8 [shape = 'u8[32768]{0}', space=vmem, size = 0x8000, scoped, tag = 'input window, operand 2, single buffered']
    #allocation9 [shape = 'u8[131072]{0}', space=vmem, size = 0x20000, scoped, tag = 'output window, operand 0']
    %9 = vsyncpa [#allocation4], 0
    %s10 = scalar_lea.sflag [#allocation4], 1
    %11 = vsyncpa %s10, 0
    %12 = vsyncpa [#allocation7], 0
    %s13 = scalar_lea.sflag [#allocation7], 1
    %14 = vsyncpa %s13, 0
    %15 = vsyncpa [#allocation5], 0
    %s16 = scalar_lea.sflag [#allocation5], 1
    %17 = vsyncpa %s16, 0
    loop: start=0, step=1, limit=4
    $region2: #{tpu_custom_call.1} parent=1 // loop_pre_header
      _
    $region3: #{tpu_custom_call.1} parent=1 // loop_header
      %s19 = sphi 0, %s23
      %p20 = scmp.ge.s32.totalorder %s19, 4
      %s26 = sphi 0, %s45
      %s27 = sphi 0, %s41
      %s28 = sphi 0, %s37
      %s29 = sphi 0, %s26
      %s30 = sphi 0, %s27
      %s31 = sphi 0, %s28
      %s32 = sphi 0, %s29
      %s33 = sphi 0, %s30
      %s34 = sphi 0, %s31
      %s52 = sphi 0, %s54
      %s55 = sphi 0, %s52
      %s56 = sphi 0, %s55
      %s72 = sphi 0, %s56
      %s78 = sphi 0, %s80
      %s81 = sphi 0, %s78
      %s82 = sphi 0, %s81
      %s98 = sphi 0, %s82
      %s102 = sphi 0, %s102
      %s104 = sphi 0, %s102
      %s105 = sphi 0, %s104
      %s119 = sphi 0, %s105
      %s123 = sphi 0, %s123
      %s125 = sphi 0, %s123
      %s126 = sphi 0, %s125
      %s140 = sphi 0, %s126
      %s148 = sphi 0, %s150
      %s151 = sphi 0, %s148
      %s152 = sphi 0, %s151
      %s168 = sphi 0, %s152
    $region4: #{tpu_custom_call.1} parent=1 // loop_header_branch
      %22 = sbr.rel (%p20) target = $region8
    $region5: #{tpu_custom_call.1} parent=1 // loop_body
      %s24 = ssub.s32 %s19, 1
      %s25 = ssub.s32 %s19, 2
      %s35 = sadd.s32 1, %s28
      %p36 = scmp.ge.s32.totalorder %s35, 1
      %s37 = scalar_select %p36, 0, %s35
      %s38 = sadd.s32 1, %s27
      %s39 = scalar_select %p36, %s38, %s27
      %p40 = scmp.ge.s32.totalorder %s39, 1
      %s41 = scalar_select %p40, 0, %s39
      %s42 = sadd.s32 1, %s26
      %s43 = scalar_select %p40, %s42, %s26
      %p44 = scmp.ge.s32.totalorder %s43, 2
      %s45 = scalar_select %p44, 0, %s43
      %s46 = ssub.s32 %s26, %s45
      %s47 = ssub.s32 %s27, %s41
      %s48 = sor.u32 %s46, %s47
      %s49 = ssub.s32 %s28, %s37
      %s50 = sor.u32 %s48, %s49
      %p51 = scmp.eq.s32.totalorder %s50, 0
      %s53 = sadd.s32 %s52, 1
      %s54 = scalar_select %p51, %s52, %s53
      %p57 = pneg %p51
      %p58 = scmp.eq.s32.totalorder %s19, 1
      %p59 = por %p57, %p58
      %p60 = scmp.ne.s32.totalorder %s52, %s55
      %p61 = scmp.eq.s32.totalorder %s19, 0
      %p62 = por %p60, %p61
      %p63 = scmp.ne.s32.totalorder %s52, %s55
      %p64 = scmp.eq.s32.totalorder %s24, 1
      %p65 = por %p63, %p64
      %p66 = scmp.ne.s32.totalorder %s55, %s56
      %p67 = scmp.eq.s32.totalorder %s24, 0
      %p68 = por %p66, %p67
      %p69 = scmp.ne.s32.totalorder %s55, %s56
      %p70 = scmp.eq.s32.totalorder %s25, 1
      %p71 = por %p69, %p70
      %p73 = scmp.ne.s32.totalorder %s56, %s72
      %p74 = scmp.eq.s32.totalorder %s25, 0
      %p75 = por %p73, %p74
      %s76 = ssub.s32 %s26, %s45
      %p77 = scmp.eq.s32.totalorder %s76, 0
      %s79 = sadd.s32 %s78, 1
      %s80 = scalar_select %p77, %s78, %s79
      %p83 = pneg %p77
      %p84 = scmp.eq.s32.totalorder %s19, 1
      %p85 = por %p83, %p84
      %p86 = scmp.ne.s32.totalorder %s78, %s81
      %p87 = scmp.eq.s32.totalorder %s19, 0
      %p88 = por %p86, %p87
      %p89 = scmp.ne.s32.totalorder %s78, %s81
      %p90 = scmp.eq.s32.totalorder %s24, 1
      %p91 = por %p89, %p90
      %p92 = scmp.ne.s32.totalorder %s81, %s82
      %p93 = scmp.eq.s32.totalorder %s24, 0
      %p94 = por %p92, %p93
      %p95 = scmp.ne.s32.totalorder %s81, %s82
      %p96 = scmp.eq.s32.totalorder %s25, 1
      %p97 = por %p95, %p96
      %p99 = scmp.ne.s32.totalorder %s82, %s98
      %p100 = scmp.eq.s32.totalorder %s25, 0
      %p101 = por %p99, %p100
      %s103 = sadd.s32 %s102, 1
      %p106 = scmp.eq.s32.totalorder %s19, 1
      %p107 = scmp.ne.s32.totalorder %s102, %s104
      %p108 = scmp.eq.s32.totalorder %s19, 0
      %p109 = por %p107, %p108
      %p110 = scmp.ne.s32.totalorder %s102, %s104
      %p111 = scmp.eq.s32.totalorder %s24, 1
      %p112 = por %p110, %p111
      %p113 = scmp.ne.s32.totalorder %s104, %s105
      %p114 = scmp.eq.s32.totalorder %s24, 0
      %p115 = por %p113, %p114
      %p116 = scmp.ne.s32.totalorder %s104, %s105
      %p117 = scmp.eq.s32.totalorder %s25, 1
      %p118 = por %p116, %p117
      %p120 = scmp.ne.s32.totalorder %s105, %s119
      %p121 = scmp.eq.s32.totalorder %s25, 0
      %p122 = por %p120, %p121
      %s124 = sadd.s32 %s123, 1
      %p127 = scmp.eq.s32.totalorder %s19, 1
      %p128 = scmp.ne.s32.totalorder %s123, %s125
      %p129 = scmp.eq.s32.totalorder %s19, 0
      %p130 = por %p128, %p129
      %p131 = scmp.ne.s32.totalorder %s123, %s125
      %p132 = scmp.eq.s32.totalorder %s24, 1
      %p133 = por %p131, %p132
      %p134 = scmp.ne.s32.totalorder %s125, %s126
      %p135 = scmp.eq.s32.totalorder %s24, 0
      %p136 = por %p134, %p135
      %p137 = scmp.ne.s32.totalorder %s125, %s126
      %p138 = scmp.eq.s32.totalorder %s25, 1
      %p139 = por %p137, %p138
      %p141 = scmp.ne.s32.totalorder %s126, %s140
      %p142 = scmp.eq.s32.totalorder %s25, 0
      %p143 = por %p141, %p142
      %s144 = ssub.s32 %s26, %s45
      %s145 = ssub.s32 %s27, %s41
      %s146 = sor.u32 %s144, %s145
      %p147 = scmp.eq.s32.totalorder %s146, 0
      %s149 = sadd.s32 %s148, 1
      %s150 = scalar_select %p147, %s148, %s149
      %p153 = pneg %p147
      %p154 = scmp.eq.s32.totalorder %s19, 1
      %p155 = por %p153, %p154
      %p156 = scmp.ne.s32.totalorder %s148, %s151
      %p157 = scmp.eq.s32.totalorder %s19, 0
      %p158 = por %p156, %p157
      %p159 = scmp.ne.s32.totalorder %s148, %s151
      %p160 = scmp.eq.s32.totalorder %s24, 1
      %p161 = por %p159, %p160
      %p162 = scmp.ne.s32.totalorder %s151, %s152
      %p163 = scmp.eq.s32.totalorder %s24, 0
      %p164 = por %p162, %p163
      %p165 = scmp.ne.s32.totalorder %s151, %s152
      %p166 = scmp.eq.s32.totalorder %s25, 1
      %p167 = por %p165, %p166
      %p169 = scmp.ne.s32.totalorder %s152, %s168
      %p170 = scmp.eq.s32.totalorder %s25, 0
      %p171 = por %p169, %p170
      %p172 = scmp.le.s32.totalorder 1, %s19
      %p173 = scmp.lt.s32.totalorder %s19, 3
      %p174 = pnand %p172, %p173
      %p175 = pneg %p174
      // Predicated region
      $region9: #{tpu_custom_call.1} parent=5 // pred_check
        _
      $region10: #{tpu_custom_call.1} parent=5 // pred_check_branch
        %177 = sbr.rel (%p174) target = $region12
      $region11: #{tpu_custom_call.1} parent=5 // pred_region
        %s178 = ssub.s32 %s19, 1
        // Predicated region
        $region13: #{tpu_custom_call.1} parent=11 // pred_check
          %p179 = pneg %p115
        $region14: #{tpu_custom_call.1} parent=11 // pred_check_branch
          %181 = sbr.rel (%p179) target = $region16
        $region15: #{tpu_custom_call.1} parent=11 // pred_region
          %s183 = ssub.s32 1024, 1024
          %184 = vsyncadd [#allocation7], %s183
          %s185 = sshll.u32 [#allocation8], 4
          %s186 = int_to_ptr.vmem [resolvable:$true] %s185
          %191 = dma.hbm_to_vmem [thread:$0]  %s2, 1024, %s186, [#allocation7], 64, 64, 4
        $region16: #{tpu_custom_call.1} parent=11 // pred_fallthru
          _
        // Predicated region
        $region17: #{tpu_custom_call.1} parent=11 // pred_check
          %p192 = pneg %p136
        $region18: #{tpu_custom_call.1} parent=11 // pred_check_branch
          %194 = sbr.rel (%p192) target = $region20
        $region19: #{tpu_custom_call.1} parent=11 // pred_region
          _
        $region20: #{tpu_custom_call.1} parent=11 // pred_fallthru
          _
      $region12: #{tpu_custom_call.1} parent=5 // pred_fallthru
        _
      %p195 = scmp.lt.s32.totalorder %s19, 2
      // Predicated region
      $region21: #{tpu_custom_call.1} parent=5 // pred_check
        %p196 = pneg %p195
      $region22: #{tpu_custom_call.1} parent=5 // pred_check_branch
        %198 = sbr.rel (%p196) target = $region24
      $region23: #{tpu_custom_call.1} parent=5 // pred_region
        // Predicated region
        $region25: #{tpu_custom_call.1} parent=23 // pred_check
          %p199 = pneg %p62
        $region26: #{tpu_custom_call.1} parent=23 // pred_check_branch
          %201 = sbr.rel (%p199) target = $region28
        $region27: #{tpu_custom_call.1} parent=23 // pred_region
          %s202 = sand.u32 %s52, 1
          %s203 = scalar_lea.sflag [#allocation4], %s202
          %s204 = sand.u32 %s52, 1
          %s205 = smul.addr %s204, 128
          %s206 = scalar_lea.vmem [#allocation3], %s205
          %s207 = smul.u32 16, %s27
          %s209 = ssub.s32 2048, 2048
          %210 = vsyncadd %s203, %s209
          %s211 = sadd.s32 %s28, %s207
          %s212 = smul.addr %s26, 16
          %s213 = sadd.s32 %s211, %s212
          %s214 = smul.addr %s213, 128
          %s215 = scalar_lea.hbm %s0, %s214
          %s216 = sshll.u32 %s206, 4
          %s217 = int_to_ptr.vmem [resolvable:$true] %s216
          %222 = dma.hbm_to_vmem [thread:$0]  %s215, 2048, %s217, %s203, 128, 128, 8
        $region28: #{tpu_custom_call.1} parent=23 // pred_fallthru
          _
        // Predicated region
        $region29: #{tpu_custom_call.1} parent=23 // pred_check
          %p223 = pneg %p88
        $region30: #{tpu_custom_call.1} parent=23 // pred_check_branch
          %225 = sbr.rel (%p223) target = $region32
        $region31: #{tpu_custom_call.1} parent=23 // pred_region
          %s226 = sand.u32 %s19, 1
          %s227 = scalar_lea.sflag [#allocation7], %s226
          %s228 = sand.u32 %s78, 1
          %s229 = smul.addr %s228, 64
          %s230 = scalar_lea.vmem [#allocation6], %s229
          %s232 = ssub.s32 1024, 1024
          %233 = vsyncadd %s227, %s232
          %s234 = smul.addr %s26, 16
          %s235 = smul.addr %s234, 64
          %s236 = scalar_lea.hbm %s1, %s235
          %s237 = sshll.u32 %s230, 4
          %s238 = int_to_ptr.vmem [resolvable:$true] %s237
          %243 = dma.hbm_to_vmem [thread:$0]  %s236, 1024, %s238, %s227, 64, 64, 4
        $region32: #{tpu_custom_call.1} parent=23 // pred_fallthru
          _
      $region24: #{tpu_custom_call.1} parent=5 // pred_fallthru
        _
      %p244 = scmp.le.s32.totalorder 1, %s19
      %p245 = scmp.lt.s32.totalorder %s19, 3
      %p246 = pnand %p244, %p245
      %p247 = pneg %p246
      // Predicated region
      $region33: #{tpu_custom_call.1} parent=5 // pred_check
        _
      $region34: #{tpu_custom_call.1} parent=5 // pred_check_branch
        %249 = sbr.rel (%p246) target = $region36
      $region35: #{tpu_custom_call.1} parent=5 // pred_region
        %s250 = ssub.s32 %s19, 1
        %s251 = sand.u32 %s55, 1
        %s252 = scalar_lea.sflag [#allocation4], %s251
        %s253 = sand.u32 %s55, 1
        %s254 = smul.addr %s253, 128
        %s255 = scalar_lea.vmem [#allocation3], %s254
        // Predicated region
        $region37: #{tpu_custom_call.1} parent=35 // pred_check
          %p256 = pneg %p68
        $region38: #{tpu_custom_call.1} parent=35 // pred_check_branch
          %258 = sbr.rel (%p256) target = $region40
        $region39: #{tpu_custom_call.1} parent=35 // pred_region
          %259 = dma.done %s252, 2048
        $region40: #{tpu_custom_call.1} parent=35 // pred_fallthru
          _
        %s260 = sand.u32 %s24, 1
        %s261 = scalar_lea.sflag [#allocation7], %s260
        %s262 = sand.u32 %s81, 1
        %s263 = smul.addr %s262, 64
        %s264 = scalar_lea.vmem [#allocation6], %s263
        // Predicated region
        $region41: #{tpu_custom_call.1} parent=35 // pred_check
          %p265 = pneg %p94
        $region42: #{tpu_custom_call.1} parent=35 // pred_check_branch
          %267 = sbr.rel (%p265) target = $region44
        $region43: #{tpu_custom_call.1} parent=35 // pred_region
          %268 = dma.done %s261, 1024
        $region44: #{tpu_custom_call.1} parent=35 // pred_fallthru
          _
        // Predicated region
        $region45: #{tpu_custom_call.1} parent=35 // pred_check
          %p269 = pneg %p115
        $region46: #{tpu_custom_call.1} parent=35 // pred_check_branch
          %271 = sbr.rel (%p269) target = $region48
        $region47: #{tpu_custom_call.1} parent=35 // pred_region
          %272 = dma.done [#allocation7], 1024
        $region48: #{tpu_custom_call.1} parent=35 // pred_fallthru
          _
        %s273 = sand.u32 %s55, 1
        %s274 = scalar_lea.sflag [#allocation4], %s273
        %s275 = sand.u32 %s55, 1
        %s276 = smul.addr %s275, 128
        %s277 = scalar_lea.vmem [#allocation3], %s276
        %p278 = pneg %p68
        %p279 = pneg %p65
        %s280 = sand.u32 %s24, 1
        %s281 = scalar_lea.sflag [#allocation7], %s280
        %s282 = sand.u32 %s81, 1
        %s283 = smul.addr %s282, 64
        %s284 = scalar_lea.vmem [#allocation6], %s283
        %p285 = pneg %p94
        %p286 = pneg %p91
        %p287 = pneg %p115
        %p288 = pneg %p112
        %p289 = pneg %p136
        %p290 = pneg %p133
        %p291 = pneg %p164
        %p292 = pneg %p161
        %s293 = sand.u32 %s151, 1
        %s294 = scalar_lea.sflag [#allocation5], %s293
        %s295 = sand.u32 %s151, 1
        %s296 = smul.addr %s295, 128
        %s297 = scalar_lea.vmem [#allocation9], %s296
        %s298 = smul.u32 16, %s30
        %s299 = smul.u32 16, %s30
        %p301 = scmp.eq.s32.totalorder %s31, 0
        // Predicated region
        $region49: #{tpu_custom_call.1} parent=35 // pred_check
          %p302 = pneg %p301
        $region50: #{tpu_custom_call.1} parent=35 // pred_check_branch
          %304 = sbr.rel (%p302) target = $region52
        $region51: #{tpu_custom_call.1} parent=35 // pred_region
          %305 = vst [vmem:[#allocation2] sm:$0xff] 0.0
          %306 = vst [vmem:[#allocation2 + $0x8] sm:$0xff] 0.0
          %307 = vst [vmem:[#allocation2 + $0x10] sm:$0xff] 0.0
          %308 = vst [vmem:[#allocation2 + $0x18] sm:$0xff] 0.0
          %309 = vst [vmem:[#allocation2 + $0x20] sm:$0xff] 0.0
          %310 = vst [vmem:[#allocation2 + $0x28] sm:$0xff] 0.0
          %311 = vst [vmem:[#allocation2 + $0x30] sm:$0xff] 0.0
          %312 = vst [vmem:[#allocation2 + $0x38] sm:$0xff] 0.0
          %313 = vst [vmem:[#allocation2 + $0x40] sm:$0xff] 0.0
          %314 = vst [vmem:[#allocation2 + $0x48] sm:$0xff] 0.0
          %315 = vst [vmem:[#allocation2 + $0x50] sm:$0xff] 0.0
          %316 = vst [vmem:[#allocation2 + $0x58] sm:$0xff] 0.0
          %317 = vst [vmem:[#allocation2 + $0x60] sm:$0xff] 0.0
          %318 = vst [vmem:[#allocation2 + $0x68] sm:$0xff] 0.0
          %319 = vst [vmem:[#allocation2 + $0x70] sm:$0xff] 0.0
          %320 = vst [vmem:[#allocation2 + $0x78] sm:$0xff] 0.0
        $region52: #{tpu_custom_call.1} parent=35 // pred_fallthru
          _
        %s321 = smul.u32 %s31, 128
        %s322 = sshra.s32 %s321, 3
        %s323 = sand.u32 %s321, 7
        %s324 = smul.addr %s322, 4
        %s325 = scalar_lea.vmem %s264, %s324 [#allocation6]
        %v326 = vld [vmem:[%s325] sm:$0xf]
        %v327 = vld [vmem:[%s325 + $0x4] sm:$0xf]
        %v328 = vld [vmem:[%s325 + $0x8] sm:$0xf]
        %v329 = vld [vmem:[%s325 + $0xc] sm:$0xf]
        %v330 = vld [vmem:[%s325 + $0x10] sm:$0xf]
        %v331 = vld [vmem:[%s325 + $0x14] sm:$0xf]
        %v332 = vld [vmem:[%s325 + $0x18] sm:$0xf]
        %v333 = vld [vmem:[%s325 + $0x1c] sm:$0xf]
        %v334 = vld [vmem:[%s325 + $0x20] sm:$0xf]
        %v335 = vld [vmem:[%s325 + $0x24] sm:$0xf]
        %v336 = vld [vmem:[%s325 + $0x28] sm:$0xf]
        %v337 = vld [vmem:[%s325 + $0x2c] sm:$0xf]
        %v338 = vld [vmem:[%s325 + $0x30] sm:$0xf]
        %v339 = vld [vmem:[%s325 + $0x34] sm:$0xf]
        %v340 = vld [vmem:[%s325 + $0x38] sm:$0xf]
        %v341 = vld [vmem:[%s325 + $0x3c] sm:$0xf]
        %v342 = vld [vmem:[#allocation2] sm:$0xff]
        %v343 = vld [vmem:[#allocation2 + $0x8] sm:$0xff]
        %v344 = vld [vmem:[#allocation2 + $0x10] sm:$0xff]
        %v345 = vld [vmem:[#allocation2 + $0x18] sm:$0xff]
        %v346 = vld [vmem:[#allocation2 + $0x20] sm:$0xff]
        %v347 = vld [vmem:[#allocation2 + $0x28] sm:$0xff]
        %v348 = vld [vmem:[#allocation2 + $0x30] sm:$0xff]
        %v349 = vld [vmem:[#allocation2 + $0x38] sm:$0xff]
        %v350 = vld [vmem:[#allocation2 + $0x40] sm:$0xff]
        %v351 = vld [vmem:[#allocation2 + $0x48] sm:$0xff]
        %v352 = vld [vmem:[#allocation2 + $0x50] sm:$0xff]
        %v353 = vld [vmem:[#allocation2 + $0x58] sm:$0xff]
        %v354 = vld [vmem:[#allocation2 + $0x60] sm:$0xff]
        %v355 = vld [vmem:[#allocation2 + $0x68] sm:$0xff]
        %v356 = vld [vmem:[#allocation2 + $0x70] sm:$0xff]
        %v357 = vld [vmem:[#allocation2 + $0x78] sm:$0xff]
        %v358 = vld [vmem:[%s255] sm:$0xff]
        %v359 = vld [vmem:[%s255 + $0x8] sm:$0xff]
        %v360 = vld [vmem:[%s255 + $0x10] sm:$0xff]
        %v361 = vld [vmem:[%s255 + $0x18] sm:$0xff]
        %v362 = vld [vmem:[%s255 + $0x20] sm:$0xff]
        %v363 = vld [vmem:[%s255 + $0x28] sm:$0xff]
        %v364 = vld [vmem:[%s255 + $0x30] sm:$0xff]
        %v365 = vld [vmem:[%s255 + $0x38] sm:$0xff]
        %v366 = vld [vmem:[%s255 + $0x40] sm:$0xff]
        %v367 = vld [vmem:[%s255 + $0x48] sm:$0xff]
        %v368 = vld [vmem:[%s255 + $0x50] sm:$0xff]
        %v369 = vld [vmem:[%s255 + $0x58] sm:$0xff]
        %v370 = vld [vmem:[%s255 + $0x60] sm:$0xff]
        %v371 = vld [vmem:[%s255 + $0x68] sm:$0xff]
        %v372 = vld [vmem:[%s255 + $0x70] sm:$0xff]
        %v373 = vld [vmem:[%s255 + $0x78] sm:$0xff]
        %v374 = vpack.c.bf16 %v359, %v358
        %v375 = vpack.c.bf16 %v361, %v360
        %v376 = vpack.c.bf16 %v363, %v362
        %v377 = vpack.c.bf16 %v365, %v364
        %v378 = vpack.c.bf16 %v367, %v366
        %v379 = vpack.c.bf16 %v369, %v368
        %v380 = vpack.c.bf16 %v371, %v370
        %v381 = vpack.c.bf16 %v373, %v372
        %v398 = vunpack.c.l.b16 %v326
        %v399 = vunpack.c.l.b16 %v327
        %v400 = vunpack.c.l.b16 %v328
        %v401 = vunpack.c.l.b16 %v329
        %v402 = vunpack.c.l.b16 %v330
        %v403 = vunpack.c.l.b16 %v331
        %v404 = vunpack.c.l.b16 %v332
        %v405 = vunpack.c.l.b16 %v333
        %v406 = vunpack.c.l.b16 %v334
        %v407 = vunpack.c.l.b16 %v335
        %v408 = vunpack.c.l.b16 %v336
        %v409 = vunpack.c.l.b16 %v337
        %v410 = vunpack.c.l.b16 %v338
        %v411 = vunpack.c.l.b16 %v339
        %v412 = vunpack.c.l.b16 %v340
        %v413 = vunpack.c.l.b16 %v341
        %v414 = vpack.c.b16 %v399, %v398
        %v415 = vpack.c.b16 %v401, %v400
        %v416 = vpack.c.b16 %v403, %v402
        %v417 = vpack.c.b16 %v405, %v404
        %v418 = vpack.c.b16 %v407, %v406
        %v419 = vpack.c.b16 %v409, %v408
        %v420 = vpack.c.b16 %v411, %v410
        %v421 = vpack.c.b16 %v413, %v412
        %430 = vmatprep.subr.bf16.mxu0 0
        %431 = vmatpush1.bf16.msra.mxu0 %v421
        %432 = vmatprep.subr.bf16.mxu0 0
        %433 = vmatpush1.bf16.msra.mxu0 %v420
        %434 = vmatprep.subr.bf16.mxu0 0
        %435 = vmatpush1.bf16.msra.mxu0 %v419
        %436 = vmatprep.subr.bf16.mxu0 0
        %437 = vmatpush1.bf16.msra.mxu0 %v418
        %438 = vmatprep.subr.bf16.mxu0 0
        %439 = vmatpush1.bf16.msra.mxu0 %v417
        %440 = vmatprep.subr.bf16.mxu0 0
        %441 = vmatpush1.bf16.msra.mxu0 %v416
        %442 = vmatprep.subr.bf16.mxu0 0
        %443 = vmatpush1.bf16.msra.mxu0 %v415
        %444 = vmatprep.subr.bf16.mxu0 0
        %445 = vmatpush1.bf16.msra.mxu0 %v414
        %446 = vmatprep.subr.bf16.mxu0 0
        %447 = vmatpush2.bf16.msra.mxu0 0
        %448 = vmatprep.subr.bf16.mxu0 0
        %449 = vmatpush2.bf16.msra.mxu0 0
        %450 = vmatprep.subr.bf16.mxu0 0
        %451 = vmatpush2.bf16.msra.mxu0 0
        %452 = vmatprep.subr.bf16.mxu0 0
        %453 = vmatpush2.bf16.msra.mxu0 0
        %454 = vmatprep.subr.bf16.mxu0 0
        %455 = vmatpush2.bf16.msra.mxu0 0
        %456 = vmatprep.subr.bf16.mxu0 0
        %457 = vmatpush2.bf16.msra.mxu0 0
        %458 = vmatprep.subr.bf16.mxu0 0
        %459 = vmatpush2.bf16.msra.mxu0 0
        %460 = vmatprep.subr.bf16.mxu0 0
        %461 = vmatpush2.bf16.msra.mxu0 0
        %462 = vmatprep.mubr.bf16.mxu0 0
        %463 = vmatmul.mubr.bf16.gmra.mxu0 %v374
        %v464 = vpop.f32.mrf.mxu0
        %v465 = vadd.f32 0.0, %v464
        %v466 = vpop.f32.mrf.mxu0
        %v467 = vpop.f32.mrf.mxu0
        %v468 = vadd.f32 0.0, %v467
        %v469 = vpop.f32.mrf.mxu0
        %470 = vmatprep.mubr.bf16.mxu0 0
        %471 = vmatmul.mubr.bf16.gmra.mxu0 %v375
        %v472 = vpop.f32.mrf.mxu0
        %v473 = vadd.f32 0.0, %v472
        %v474 = vpop.f32.mrf.mxu0
        %v475 = vpop.f32.mrf.mxu0
        %v476 = vadd.f32 0.0, %v475
        %v477 = vpop.f32.mrf.mxu0
        %478 = vmatprep.mubr.bf16.mxu0 0
        %479 = vmatmul.mubr.bf16.gmra.mxu0 %v376
        %v480 = vpop.f32.mrf.mxu0
        %v481 = vadd.f32 0.0, %v480
        %v482 = vpop.f32.mrf.mxu0
        %v483 = vpop.f32.mrf.mxu0
        %v484 = vadd.f32 0.0, %v483
        %v485 = vpop.f32.mrf.mxu0
        %486 = vmatprep.mubr.bf16.mxu0 0
        %487 = vmatmul.mubr.bf16.gmra.mxu0 %v377
        %v488 = vpop.f32.mrf.mxu0
        %v489 = vadd.f32 0.0, %v488
        %v490 = vpop.f32.mrf.mxu0
        %v491 = vpop.f32.mrf.mxu0
        %v492 = vadd.f32 0.0, %v491
        %v493 = vpop.f32.mrf.mxu0
        %494 = vmatprep.mubr.bf16.mxu0 0
        %495 = vmatmul.mubr.bf16.gmra.mxu0 %v378
        %v496 = vpop.f32.mrf.mxu0
        %v497 = vadd.f32 0.0, %v496
        %v498 = vpop.f32.mrf.mxu0
        %v499 = vpop.f32.mrf.mxu0
        %v500 = vadd.f32 0.0, %v499
        %v501 = vpop.f32.mrf.mxu0
        %502 = vmatprep.mubr.bf16.mxu0 0
        %503 = vmatmul.mubr.bf16.gmra.mxu0 %v379
        %v504 = vpop.f32.mrf.mxu0
        %v505 = vadd.f32 0.0, %v504
        %v506 = vpop.f32.mrf.mxu0
        %v507 = vpop.f32.mrf.mxu0
        %v508 = vadd.f32 0.0, %v507
        %v509 = vpop.f32.mrf.mxu0
        %510 = vmatprep.mubr.bf16.mxu0 0
        %511 = vmatmul.mubr.bf16.gmra.mxu0 %v380
        %v512 = vpop.f32.mrf.mxu0
        %v513 = vadd.f32 0.0, %v512
        %v514 = vpop.f32.mrf.mxu0
        %v515 = vpop.f32.mrf.mxu0
        %v516 = vadd.f32 0.0, %v515
        %v517 = vpop.f32.mrf.mxu0
        %518 = vmatprep.mubr.bf16.mxu0 0
        %519 = vmatmul.mubr.bf16.gmra.mxu0 %v381
        %v520 = vpop.f32.mrf.mxu0
        %v521 = vadd.f32 0.0, %v520
        %v522 = vpop.f32.mrf.mxu0
        %v523 = vpop.f32.mrf.mxu0
        %v524 = vadd.f32 0.0, %v523
        %v525 = vpop.f32.mrf.mxu0
        %526 = vdwg.mxu0
        %v527 = vadd.f32 %v342, %v465
        %v528 = vadd.f32 %v343, %v468
        %v529 = vadd.f32 %v344, %v473
        %v530 = vadd.f32 %v345, %v476
        %v531 = vadd.f32 %v346, %v481
        %v532 = vadd.f32 %v347, %v484
        %v533 = vadd.f32 %v348, %v489
        %v534 = vadd.f32 %v349, %v492
        %v535 = vadd.f32 %v350, %v497
        %v536 = vadd.f32 %v351, %v500
        %v537 = vadd.f32 %v352, %v505
        %v538 = vadd.f32 %v353, %v508
        %v539 = vadd.f32 %v354, %v513
        %v540 = vadd.f32 %v355, %v516
        %v541 = vadd.f32 %v356, %v521
        %v542 = vadd.f32 %v357, %v524
        %543 = vst [vmem:[#allocation2] sm:$0xff] %v527
        %544 = vst [vmem:[#allocation2 + $0x8] sm:$0xff] %v528
        %545 = vst [vmem:[#allocation2 + $0x10] sm:$0xff] %v529
        %546 = vst [vmem:[#allocation2 + $0x18] sm:$0xff] %v530
        %547 = vst [vmem:[#allocation2 + $0x20] sm:$0xff] %v531
        %548 = vst [vmem:[#allocation2 + $0x28] sm:$0xff] %v532
        %549 = vst [vmem:[#allocation2 + $0x30] sm:$0xff] %v533
        %550 = vst [vmem:[#allocation2 + $0x38] sm:$0xff] %v534
        %551 = vst [vmem:[#allocation2 + $0x40] sm:$0xff] %v535
        %552 = vst [vmem:[#allocation2 + $0x48] sm:$0xff] %v536
        %553 = vst [vmem:[#allocation2 + $0x50] sm:$0xff] %v537
        %554 = vst [vmem:[#allocation2 + $0x58] sm:$0xff] %v538
        %555 = vst [vmem:[#allocation2 + $0x60] sm:$0xff] %v539
        %556 = vst [vmem:[#allocation2 + $0x68] sm:$0xff] %v540
        %557 = vst [vmem:[#allocation2 + $0x70] sm:$0xff] %v541
        %558 = vst [vmem:[#allocation2 + $0x78] sm:$0xff] %v542
        // Predicated region
        $region53: #{tpu_custom_call.1} parent=35 // pred_check
          %p559 = pneg %p301
        $region54: #{tpu_custom_call.1} parent=35 // pred_check_branch
          %561 = sbr.rel (%p559) target = $region56
        $region55: #{tpu_custom_call.1} parent=35 // pred_region
          %v562 = vld [vmem:[#allocation2] sm:$0xff]
          %v563 = vld [vmem:[#allocation2 + $0x8] sm:$0xff]
          %v564 = vld [vmem:[#allocation2 + $0x10] sm:$0xff]
          %v565 = vld [vmem:[#allocation2 + $0x18] sm:$0xff]
          %v566 = vld [vmem:[#allocation2 + $0x20] sm:$0xff]
          %v567 = vld [vmem:[#allocation2 + $0x28] sm:$0xff]
          %v568 = vld [vmem:[#allocation2 + $0x30] sm:$0xff]
          %v569 = vld [vmem:[#allocation2 + $0x38] sm:$0xff]
          %v570 = vld [vmem:[#allocation2 + $0x40] sm:$0xff]
          %v571 = vld [vmem:[#allocation2 + $0x48] sm:$0xff]
          %v572 = vld [vmem:[#allocation2 + $0x50] sm:$0xff]
          %v573 = vld [vmem:[#allocation2 + $0x58] sm:$0xff]
          %v574 = vld [vmem:[#allocation2 + $0x60] sm:$0xff]
          %v575 = vld [vmem:[#allocation2 + $0x68] sm:$0xff]
          %v576 = vld [vmem:[#allocation2 + $0x70] sm:$0xff]
          %v577 = vld [vmem:[#allocation2 + $0x78] sm:$0xff]
          %v578 = vpack.c.bf16 %v563, %v562
          %v579 = vpack.c.bf16 %v565, %v564
          %v580 = vpack.c.bf16 %v567, %v566
          %v581 = vpack.c.bf16 %v569, %v568
          %v582 = vpack.c.bf16 %v571, %v570
          %v583 = vpack.c.bf16 %v573, %v572
          %v584 = vpack.c.bf16 %v575, %v574
          %v585 = vpack.c.bf16 %v577, %v576
          %v586 = vld [vmem:[#allocation8] sm:$0xf]
          %v587 = vld [vmem:[#allocation8 + $0x4] sm:$0xf]
          %v588 = vld [vmem:[#allocation8 + $0x8] sm:$0xf]
          %v589 = vld [vmem:[#allocation8 + $0xc] sm:$0xf]
          %v590 = vld [vmem:[#allocation8 + $0x10] sm:$0xf]
          %v591 = vld [vmem:[#allocation8 + $0x14] sm:$0xf]
          %v592 = vld [vmem:[#allocation8 + $0x18] sm:$0xf]
          %v593 = vld [vmem:[#allocation8 + $0x1c] sm:$0xf]
          %v594 = vld [vmem:[#allocation8 + $0x20] sm:$0xf]
          %v595 = vld [vmem:[#allocation8 + $0x24] sm:$0xf]
          %v596 = vld [vmem:[#allocation8 + $0x28] sm:$0xf]
          %v597 = vld [vmem:[#allocation8 + $0x2c] sm:$0xf]
          %v598 = vld [vmem:[#allocation8 + $0x30] sm:$0xf]
          %v599 = vld [vmem:[#allocation8 + $0x34] sm:$0xf]
          %v600 = vld [vmem:[#allocation8 + $0x38] sm:$0xf]
          %v601 = vld [vmem:[#allocation8 + $0x3c] sm:$0xf]
          %v602 = vld [vmem:[%s3] sm:$0x1]
          %v604 = vlaneseq
          %v605 = vshrl.u32 %v604, 7
          %v606 = vsub.s32 0, %v605
          %v607 = vrot.slane %v602, %v606
          %v625 = vunpack.c.l.b16 %v586
          %v626 = vunpack.c.l.b16 %v587
          %v627 = vunpack.c.l.b16 %v588
          %v628 = vunpack.c.l.b16 %v589
          %v629 = vunpack.c.l.b16 %v590
          %v630 = vunpack.c.l.b16 %v591
          %v631 = vunpack.c.l.b16 %v592
          %v632 = vunpack.c.l.b16 %v593
          %v633 = vunpack.c.l.b16 %v594
          %v634 = vunpack.c.l.b16 %v595
          %v635 = vunpack.c.l.b16 %v596
          %v636 = vunpack.c.l.b16 %v597
          %v637 = vunpack.c.l.b16 %v598
          %v638 = vunpack.c.l.b16 %v599
          %v639 = vunpack.c.l.b16 %v600
          %v640 = vunpack.c.l.b16 %v601
          %v641 = vpack.c.b16 %v626, %v625
          %v642 = vpack.c.b16 %v628, %v627
          %v643 = vpack.c.b16 %v630, %v629
          %v644 = vpack.c.b16 %v632, %v631
          %v645 = vpack.c.b16 %v634, %v633
          %v646 = vpack.c.b16 %v636, %v635
          %v647 = vpack.c.b16 %v638, %v637
          %v648 = vpack.c.b16 %v640, %v639
          %657 = vmatprep.subr.bf16.mxu0 0
          %658 = vmatpush1.bf16.msra.mxu0 %v648
          %659 = vmatprep.subr.bf16.mxu0 0
          %660 = vmatpush1.bf16.msra.mxu0 %v647
          %661 = vmatprep.subr.bf16.mxu0 0
          %662 = vmatpush1.bf16.msra.mxu0 %v646
          %663 = vmatprep.subr.bf16.mxu0 0
          %664 = vmatpush1.bf16.msra.mxu0 %v645
          %665 = vmatprep.subr.bf16.mxu0 0
          %666 = vmatpush1.bf16.msra.mxu0 %v644
          %667 = vmatprep.subr.bf16.mxu0 0
          %668 = vmatpush1.bf16.msra.mxu0 %v643
          %669 = vmatprep.subr.bf16.mxu0 0
          %670 = vmatpush1.bf16.msra.mxu0 %v642
          %671 = vmatprep.subr.bf16.mxu0 0
          %672 = vmatpush1.bf16.msra.mxu0 %v641
          %673 = vmatprep.subr.bf16.mxu0 0
          %674 = vmatpush2.bf16.msra.mxu0 0
          %675 = vmatprep.subr.bf16.mxu0 0
          %676 = vmatpush2.bf16.msra.mxu0 0
          %677 = vmatprep.subr.bf16.mxu0 0
          %678 = vmatpush2.bf16.msra.mxu0 0
          %679 = vmatprep.subr.bf16.mxu0 0
          %680 = vmatpush2.bf16.msra.mxu0 0
          %681 = vmatprep.subr.bf16.mxu0 0
          %682 = vmatpush2.bf16.msra.mxu0 0
          %683 = vmatprep.subr.bf16.mxu0 0
          %684 = vmatpush2.bf16.msra.mxu0 0
          %685 = vmatprep.subr.bf16.mxu0 0
          %686 = vmatpush2.bf16.msra.mxu0 0
          %687 = vmatprep.subr.bf16.mxu0 0
          %688 = vmatpush2.bf16.msra.mxu0 0
          %689 = vmatprep.mubr.bf16.mxu0 0
          %690 = vmatmul.mubr.bf16.gmra.mxu0 %v578
          %v691 = vpop.f32.mrf.mxu0
          %v692 = vadd.f32 %v607, %v691
          %v693 = vpop.f32.mrf.mxu0
          %v694 = vpop.f32.mrf.mxu0
          %v695 = vadd.f32 %v607, %v694
          %v696 = vpop.f32.mrf.mxu0
          %697 = vmatprep.mubr.bf16.mxu0 0
          %698 = vmatmul.mubr.bf16.gmra.mxu0 %v579
          %v699 = vpop.f32.mrf.mxu0
          %v700 = vadd.f32 %v607, %v699
          %v701 = vpop.f32.mrf.mxu0
          %v702 = vpop.f32.mrf.mxu0
          %v703 = vadd.f32 %v607, %v702
          %v704 = vpop.f32.mrf.mxu0
          %705 = vmatprep.mubr.bf16.mxu0 0
          %706 = vmatmul.mubr.bf16.gmra.mxu0 %v580
          %v707 = vpop.f32.mrf.mxu0
          %v708 = vadd.f32 %v607, %v707
          %v709 = vpop.f32.mrf.mxu0
          %v710 = vpop.f32.mrf.mxu0
          %v711 = vadd.f32 %v607, %v710
          %v712 = vpop.f32.mrf.mxu0
          %713 = vmatprep.mubr.bf16.mxu0 0
          %714 = vmatmul.mubr.bf16.gmra.mxu0 %v581
          %v715 = vpop.f32.mrf.mxu0
          %v716 = vadd.f32 %v607, %v715
          %v717 = vpop.f32.mrf.mxu0
          %v718 = vpop.f32.mrf.mxu0
          %v719 = vadd.f32 %v607, %v718
          %v720 = vpop.f32.mrf.mxu0
          %721 = vmatprep.mubr.bf16.mxu0 0
          %722 = vmatmul.mubr.bf16.gmra.mxu0 %v582
          %v723 = vpop.f32.mrf.mxu0
          %v724 = vadd.f32 %v607, %v723
          %v725 = vpop.f32.mrf.mxu0
          %v726 = vpop.f32.mrf.mxu0
          %v727 = vadd.f32 %v607, %v726
          %v728 = vpop.f32.mrf.mxu0
          %729 = vmatprep.mubr.bf16.mxu0 0
          %730 = vmatmul.mubr.bf16.gmra.mxu0 %v583
          %v731 = vpop.f32.mrf.mxu0
          %v732 = vadd.f32 %v607, %v731
          %v733 = vpop.f32.mrf.mxu0
          %v734 = vpop.f32.mrf.mxu0
          %v735 = vadd.f32 %v607, %v734
          %v736 = vpop.f32.mrf.mxu0
          %737 = vmatprep.mubr.bf16.mxu0 0
          %738 = vmatmul.mubr.bf16.gmra.mxu0 %v584
          %v739 = vpop.f32.mrf.mxu0
          %v740 = vadd.f32 %v607, %v739
          %v741 = vpop.f32.mrf.mxu0
          %v742 = vpop.f32.mrf.mxu0
          %v743 = vadd.f32 %v607, %v742
          %v744 = vpop.f32.mrf.mxu0
          %745 = vmatprep.mubr.bf16.mxu0 0
          %746 = vmatmul.mubr.bf16.gmra.mxu0 %v585
          %v747 = vpop.f32.mrf.mxu0
          %v748 = vadd.f32 %v607, %v747
          %v749 = vpop.f32.mrf.mxu0
          %v750 = vpop.f32.mrf.mxu0
          %v751 = vadd.f32 %v607, %v750
          %v752 = vpop.f32.mrf.mxu0
          %753 = vdwg.mxu0
          %754 = vst [vmem:[%s297] sm:$0xff] %v692
          %755 = vst [vmem:[%s297 + $0x8] sm:$0xff] %v695
          %756 = vst [vmem:[%s297 + $0x10] sm:$0xff] %v700
          %757 = vst [vmem:[%s297 + $0x18] sm:$0xff] %v703
          %758 = vst [vmem:[%s297 + $0x20] sm:$0xff] %v708
          %759 = vst [vmem:[%s297 + $0x28] sm:$0xff] %v711
          %760 = vst [vmem:[%s297 + $0x30] sm:$0xff] %v716
          %761 = vst [vmem:[%s297 + $0x38] sm:$0xff] %v719
          %762 = vst [vmem:[%s297 + $0x40] sm:$0xff] %v724
          %763 = vst [vmem:[%s297 + $0x48] sm:$0xff] %v727
          %764 = vst [vmem:[%s297 + $0x50] sm:$0xff] %v732
          %765 = vst [vmem:[%s297 + $0x58] sm:$0xff] %v735
          %766 = vst [vmem:[%s297 + $0x60] sm:$0xff] %v740
          %767 = vst [vmem:[%s297 + $0x68] sm:$0xff] %v743
          %768 = vst [vmem:[%s297 + $0x70] sm:$0xff] %v748
          %769 = vst [vmem:[%s297 + $0x78] sm:$0xff] %v751
        $region56: #{tpu_custom_call.1} parent=35 // pred_fallthru
          _
        %s770 = sand.u32 %s151, 1
        %s771 = scalar_lea.sflag [#allocation5], %s770
        %s772 = sand.u32 %s151, 1
        %s773 = smul.addr %s772, 128
        %s774 = scalar_lea.vmem [#allocation9], %s773
        // Predicated region
        $region57: #{tpu_custom_call.1} parent=35 // pred_check
          %p775 = pneg %p161
        $region58: #{tpu_custom_call.1} parent=35 // pred_check_branch
          %777 = sbr.rel (%p775) target = $region60
        $region59: #{tpu_custom_call.1} parent=35 // pred_region
          %s778 = smul.u32 16, %s30
          %s780 = ssub.s32 2048, 2048
          %781 = vsyncadd %s771, %s780
          %s782 = smul.addr %s29, 16
          %s783 = sadd.s32 %s778, %s782
          %s784 = smul.addr %s783, 128
          %s785 = scalar_lea.hbm %s4, %s784
          %s786 = sshll.u32 %s774, 4
          %s787 = int_to_ptr.vmem [resolvable:$true] %s786
          %792 = dma.vmem_to_hbm [thread:$0]  %s787, 2048, %s785, %s771, 128, 128, 8
        $region60: #{tpu_custom_call.1} parent=35 // pred_fallthru
          _
      $region36: #{tpu_custom_call.1} parent=5 // pred_fallthru
        _
      %p793 = scmp.le.s32.totalorder 2, %s19
      // Predicated region
      $region61: #{tpu_custom_call.1} parent=5 // pred_check
        %p794 = pneg %p793
      $region62: #{tpu_custom_call.1} parent=5 // pred_check_branch
        %796 = sbr.rel (%p794) target = $region64
      $region63: #{tpu_custom_call.1} parent=5 // pred_region
        %s797 = ssub.s32 %s19, 2
        // Predicated region
        $region65: #{tpu_custom_call.1} parent=63 // pred_check
          %p798 = pneg %p167
        $region66: #{tpu_custom_call.1} parent=63 // pred_check_branch
          %800 = sbr.rel (%p798) target = $region68
        $region67: #{tpu_custom_call.1} parent=63 // pred_region
          %s801 = sand.u32 %s152, 1
          %s802 = scalar_lea.sflag [#allocation5], %s801
          %s803 = sand.u32 %s152, 1
          %s804 = smul.addr %s803, 128
          %s805 = scalar_lea.vmem [#allocation9], %s804
          %806 = dma.done %s802, 2048
        $region68: #{tpu_custom_call.1} parent=63 // pred_fallthru
          _
      $region64: #{tpu_custom_call.1} parent=5 // pred_fallthru
        _
    $region6: #{tpu_custom_call.1} parent=1 // loop_footer
      %s23 = sadd.s32 1, %s19
    $region7: #{tpu_custom_call.1} parent=1 // loop_footer_branch
      %18 = sbr.rel target = $region3
    $region8: #{tpu_custom_call.1} parent=1 // loop_exit
      _
    %807 = vsyncpa [#allocation4], 1
    %s808 = scalar_lea.sflag [#allocation4], 1
    %809 = vsyncpa %s808, 1
    %810 = vsyncpa [#allocation7], 1
    %s811 = scalar_lea.sflag [#allocation7], 1
    %812 = vsyncpa %s811, 1
    %813 = vsyncpa [#allocation5], 1
    %s814 = scalar_lea.sflag [#allocation5], 1
    %815 = vsyncpa %s814, 1

</llo_original>
